<compile_context>
chip_gen: v6e
topology: v6e:2x2x1
jax: 0.10.0
libtpu: 0.0.40
codegen_flags: <defaults>
</compile_context>

<pallas_src>
import functools

import numpy as np
import jax
import jax.numpy as jnp
from jax.experimental import pallas as pl
from jax.experimental.pallas import tpu as pltpu


def _make_kernel(B, C, H, W, K, pad):
    HW = H * W

    def kernel(x_ref, w_ref, b_ref, masks_ref, o_ref):
        # x_ref: (B, C, HW) native dtype | w_ref: (2*K*K,) f32 SMEM (avg taps pre-scaled by 1/C)
        # b_ref: (1,) f32 SMEM | masks_ref: (2*K, HW) f32 VMEM | o_ref: (B, 1, HW) f32

        # Channel reduction: running sum & max (1/C folded into the avg-tap weights).
        # TODO(synk): for large C add an "arbitrary" channel grid axis with running
        # sum/max scratch so per-step blocks fit v7x (64 MiB) / v5e (16 MiB scoped) VMEM.
        s = x_ref[:, 0, :].astype(jnp.float32)            # (B, HW)
        m = s
        for c in range(1, C):
            xc = x_ref[:, c, :].astype(jnp.float32)
            s = s + xc
            m = jnp.maximum(m, xc)

        acc = jnp.full((B, HW), b_ref[0], dtype=jnp.float32)

        # KxK conv (zero padding) as shifted taps on the flattened (lane-dense) spatial
        # axis: column shift + col mask in the outer loop, row shift + row mask inside.
        for kj in range(K):
            dj = kj - pad
            col_m = masks_ref[K + kj:K + kj + 1, :]       # (1, HW)
            sh_j = (-dj) % HW
            s_j = pltpu.roll(s, sh_j, axis=1) if sh_j else s
            m_j = pltpu.roll(m, sh_j, axis=1) if sh_j else m
            s_j = s_j * col_m
            m_j = m_j * col_m
            for ki in range(K):
                di = ki - pad
                row_m = masks_ref[ki:ki + 1, :]           # (1, HW)
                sh_i = (-di * W) % HW
                s_ij = pltpu.roll(s_j, sh_i, axis=1) if sh_i else s_j
                m_ij = pltpu.roll(m_j, sh_i, axis=1) if sh_i else m_j
                w_a = w_ref[ki * K + kj]                  # scalar (SMEM), includes 1/C
                w_m = w_ref[K * K + ki * K + kj]          # scalar (SMEM)
                acc = acc + row_m * (w_a * s_ij + w_m * m_ij)

        o_ref[:, 0, :] = jax.nn.sigmoid(acc)

    return kernel


@functools.partial(jax.jit, static_argnames=("kernel_size",))
def spatial_attention_pallas(x, weight, bias, kernel_size=7):
    """x: (N, C, H, W); weight: (1, 2, K, K); bias: (1,).  Returns (N, 1, H, W) f32."""
    assert kernel_size in (3, 7)
    pad = 3 if kernel_size == 7 else 1
    N, C, H, W = x.shape
    K = kernel_size
    HW = H * W

    # Batch block: largest divisor of N up to 8 (amortizes per-grid-step overhead).
    B_blk = 1
    for dcand in range(min(N, 8), 0, -1):
        if N % dcand == 0:
            B_blk = dcand
            break

    # Lane-dense flatten of the spatial dims; DMA native dtype (no wrapper upcast).
    x_flat = x.reshape(N, C, HW)

    # Conv weights: fold the 1/C of the channel mean into the avg-channel taps.
    w_avg = weight[0, 0].reshape(-1) / C
    w_max = weight[0, 1].reshape(-1)
    w_flat = jnp.concatenate([w_avg, w_max]).astype(jnp.float32)   # (2*K*K,)
    b = bias.astype(jnp.float32)

    # Precomputed boundary masks: rows 0..K-1 -> row masks (di = ki-pad),
    # rows K..2K-1 -> col masks (dj = kj-pad).  Constant, tiny.
    ii = np.arange(HW) // W
    jj = np.arange(HW) % W
    masks_np = np.zeros((2 * K, HW), np.float32)
    for k in range(K):
        d = k - pad
        masks_np[k] = ((ii + d >= 0) & (ii + d < H)).astype(np.float32)
        masks_np[K + k] = ((jj + d >= 0) & (jj + d < W)).astype(np.float32)
    masks = jnp.asarray(masks_np)

    kernel = _make_kernel(B_blk, C, H, W, K, pad)

    out_flat = pl.pallas_call(
        kernel,
        out_shape=jax.ShapeDtypeStruct((N, 1, HW), jnp.float32),
        grid=(N // B_blk,),
        in_specs=[
            pl.BlockSpec((B_blk, C, HW), lambda n: (n, 0, 0)),
            pl.BlockSpec(memory_space=pltpu.MemorySpace.SMEM),   # flat conv weights
            pl.BlockSpec(memory_space=pltpu.MemorySpace.SMEM),   # bias
            pl.BlockSpec((2 * K, HW), lambda n: (0, 0)),         # boundary masks
        ],
        out_specs=pl.BlockSpec((B_blk, 1, HW), lambda n: (n, 0, 0)),
        compiler_params=pltpu.CompilerParams(
            dimension_semantics=("parallel",)),
    )(x_flat, w_flat, b, masks)

    return out_flat.reshape(N, 1, H, W)


def _reference(x, weight, bias):
    avg_x = jnp.mean(x, axis=1, keepdims=True)
    max_x = jnp.max(x, axis=1, keepdims=True)
    cat = jnp.concatenate([avg_x, max_x], axis=1)
    y = jax.lax.conv_general_dilated(
        cat, weight, window_strides=(1, 1), padding=((3, 3), (3, 3)),
        dimension_numbers=("NCHW", "OIHW", "NCHW"),
        precision=jax.lax.Precision.HIGHEST)
    y = y + bias.reshape(1, 1, 1, 1)
    return jax.nn.sigmoid(y)


if __name__ == "__main__":
    key = jax.random.PRNGKey(0)
    kx, kw, kb = jax.random.split(key, 3)

    N, C, H, W = 2, 4, 16, 16
    K = 7

    x = jax.random.normal(kx, (N, C, H, W), dtype=jnp.float32)
    # Deterministic "init" mimicking nn.Conv2d(2, 1, 7) parameter shapes.
    fan_in = 2 * K * K
    bound = 1.0 / (fan_in ** 0.5)
    weight = jax.random.uniform(kw, (1, 2, K, K), jnp.float32, -bound, bound)
    bias = jax.random.uniform(kb, (1,), jnp.float32, -bound, bound)

    out = spatial_attention_pallas(x, weight, bias, kernel_size=K)
    out = jax.block_until_ready(out)

    ref = _reference(x, weight, bias)
    assert out.shape == (N, 1, H, W)
    assert jnp.allclose(out, ref, rtol=1e-4, atol=1e-5), "mismatch vs reference"

    print("KERNEL_OK")
</pallas_src>

<mosaic_0001>
module attributes {stable_mosaic.version = 11 : i64} {
  func.func @kernel(%arg0: i32, %arg1: memref<2x4x256xf32, #tpu.memory_space<vmem>>, %arg2: memref<98xf32, #tpu.memory_space<smem>>, %arg3: memref<1xf32, #tpu.memory_space<smem>>, %arg4: memref<14x256xf32, #tpu.memory_space<vmem>>, %arg5: memref<2x1x256xf32, #tpu.memory_space<vmem>>) attributes {dimension_semantics = [#tpu.dimension_semantics<parallel>], iteration_bounds = array<i64: 1>, scalar_prefetch = 0 : i64, scratch_operands = 0 : i64, tpu.core_type = #tpu.core_type<tc>, window_params = [{transform_indices = @transform_0, window_bounds = array<i64: 2, 4, 256>}, {transform_indices = @transform_1, window_bounds = array<i64: 98>}, {transform_indices = @transform_2, window_bounds = array<i64: 1>}, {pipeline_mode = #tpu.pipeline_mode<synchronous>, transform_indices = @transform_3, window_bounds = array<i64: 14, 256>}, {transform_indices = @transform_4, window_bounds = array<i64: 2, 1, 256>}]} {
    %c0 = arith.constant 0 : index
    %c0_0 = arith.constant 0 : index
    %c0_1 = arith.constant 0 : index
    %0 = vector.load %arg1[%c0, %c0_0, %c0_1] : memref<2x4x256xf32, #tpu.memory_space<vmem>>, vector<2x1x256xf32>
    %1 = vector.shape_cast %0 : vector<2x1x256xf32> to vector<2x256xf32>
    %c0_2 = arith.constant 0 : index
    %c1 = arith.constant 1 : index
    %c0_3 = arith.constant 0 : index
    %2 = vector.load %arg1[%c0_2, %c1, %c0_3] : memref<2x4x256xf32, #tpu.memory_space<vmem>>, vector<2x1x256xf32>
    %3 = vector.shape_cast %2 : vector<2x1x256xf32> to vector<2x256xf32>
    %4 = arith.addf %1, %3 : vector<2x256xf32>
    %5 = arith.maximumf %1, %3 : vector<2x256xf32>
    %c0_4 = arith.constant 0 : index
    %c2 = arith.constant 2 : index
    %c0_5 = arith.constant 0 : index
    %6 = vector.load %arg1[%c0_4, %c2, %c0_5] : memref<2x4x256xf32, #tpu.memory_space<vmem>>, vector<2x1x256xf32>
    %7 = vector.shape_cast %6 : vector<2x1x256xf32> to vector<2x256xf32>
    %8 = arith.addf %4, %7 : vector<2x256xf32>
    %9 = arith.maximumf %5, %7 : vector<2x256xf32>
    %c0_6 = arith.constant 0 : index
    %c3 = arith.constant 3 : index
    %c0_7 = arith.constant 0 : index
    %10 = vector.load %arg1[%c0_6, %c3, %c0_7] : memref<2x4x256xf32, #tpu.memory_space<vmem>>, vector<2x1x256xf32>
    %11 = vector.shape_cast %10 : vector<2x1x256xf32> to vector<2x256xf32>
    %12 = arith.addf %8, %11 : vector<2x256xf32>
    %13 = arith.maximumf %9, %11 : vector<2x256xf32>
    %c0_8 = arith.constant 0 : index
    %14 = memref.load %arg3[%c0_8] : memref<1xf32, #tpu.memory_space<smem>>
    %15 = vector.broadcast %14 : f32 to vector<2x256xf32>
    %c7 = arith.constant 7 : index
    %c0_9 = arith.constant 0 : index
    %16 = vector.load %arg4[%c7, %c0_9] : memref<14x256xf32, #tpu.memory_space<vmem>>, vector<1x256xf32>
    %c3_i32 = arith.constant 3 : i32
    %17 = tpu.dynamic_rotate %12 by %c3_i32 dim 1 : vector<2x256xf32>, i32 -> vector<2x256xf32>
    %c3_i32_10 = arith.constant 3 : i32
    %18 = tpu.dynamic_rotate %13 by %c3_i32_10 dim 1 : vector<2x256xf32>, i32 -> vector<2x256xf32>
    %19 = vector.broadcast %16 : vector<1x256xf32> to vector<2x256xf32>
    %20 = arith.mulf %17, %19 : vector<2x256xf32>
    %21 = vector.broadcast %16 : vector<1x256xf32> to vector<2x256xf32>
    %22 = arith.mulf %18, %21 : vector<2x256xf32>
    %c0_11 = arith.constant 0 : index
    %c0_12 = arith.constant 0 : index
    %23 = vector.load %arg4[%c0_11, %c0_12] : memref<14x256xf32, #tpu.memory_space<vmem>>, vector<1x256xf32>
    %c48_i32 = arith.constant 48 : i32
    %24 = tpu.dynamic_rotate %20 by %c48_i32 dim 1 : vector<2x256xf32>, i32 -> vector<2x256xf32>
    %c48_i32_13 = arith.constant 48 : i32
    %25 = tpu.dynamic_rotate %22 by %c48_i32_13 dim 1 : vector<2x256xf32>, i32 -> vector<2x256xf32>
    %c0_14 = arith.constant 0 : index
    %26 = memref.load %arg2[%c0_14] : memref<98xf32, #tpu.memory_space<smem>>
    %c49 = arith.constant 49 : index
    %27 = memref.load %arg2[%c49] : memref<98xf32, #tpu.memory_space<smem>>
    %28 = vector.broadcast %26 : f32 to vector<2x256xf32>
    %29 = arith.mulf %28, %24 : vector<2x256xf32>
    %30 = vector.broadcast %27 : f32 to vector<2x256xf32>
    %31 = arith.mulf %30, %25 : vector<2x256xf32>
    %32 = arith.addf %29, %31 : vector<2x256xf32>
    %33 = vector.broadcast %23 : vector<1x256xf32> to vector<2x256xf32>
    %34 = arith.mulf %33, %32 : vector<2x256xf32>
    %35 = arith.addf %15, %34 : vector<2x256xf32>
    %c1_15 = arith.constant 1 : index
    %c0_16 = arith.constant 0 : index
    %36 = vector.load %arg4[%c1_15, %c0_16] : memref<14x256xf32, #tpu.memory_space<vmem>>, vector<1x256xf32>
    %c32_i32 = arith.constant 32 : i32
    %37 = tpu.dynamic_rotate %20 by %c32_i32 dim 1 : vector<2x256xf32>, i32 -> vector<2x256xf32>
    %c32_i32_17 = arith.constant 32 : i32
    %38 = tpu.dynamic_rotate %22 by %c32_i32_17 dim 1 : vector<2x256xf32>, i32 -> vector<2x256xf32>
    %c7_18 = arith.constant 7 : index
    %39 = memref.load %arg2[%c7_18] : memref<98xf32, #tpu.memory_space<smem>>
    %c56 = arith.constant 56 : index
    %40 = memref.load %arg2[%c56] : memref<98xf32, #tpu.memory_space<smem>>
    %41 = vector.broadcast %39 : f32 to vector<2x256xf32>
    %42 = arith.mulf %41, %37 : vector<2x256xf32>
    %43 = vector.broadcast %40 : f32 to vector<2x256xf32>
    %44 = arith.mulf %43, %38 : vector<2x256xf32>
    %45 = arith.addf %42, %44 : vector<2x256xf32>
    %46 = vector.broadcast %36 : vector<1x256xf32> to vector<2x256xf32>
    %47 = arith.mulf %46, %45 : vector<2x256xf32>
    %48 = arith.addf %35, %47 : vector<2x256xf32>
    %c2_19 = arith.constant 2 : index
    %c0_20 = arith.constant 0 : index
    %49 = vector.load %arg4[%c2_19, %c0_20] : memref<14x256xf32, #tpu.memory_space<vmem>>, vector<1x256xf32>
    %c16_i32 = arith.constant 16 : i32
    %50 = tpu.dynamic_rotate %20 by %c16_i32 dim 1 : vector<2x256xf32>, i32 -> vector<2x256xf32>
    %c16_i32_21 = arith.constant 16 : i32
    %51 = tpu.dynamic_rotate %22 by %c16_i32_21 dim 1 : vector<2x256xf32>, i32 -> vector<2x256xf32>
    %c14 = arith.constant 14 : index
    %52 = memref.load %arg2[%c14] : memref<98xf32, #tpu.memory_space<smem>>
    %c63 = arith.constant 63 : index
    %53 = memref.load %arg2[%c63] : memref<98xf32, #tpu.memory_space<smem>>
    %54 = vector.broadcast %52 : f32 to vector<2x256xf32>
    %55 = arith.mulf %54, %50 : vector<2x256xf32>
    %56 = vector.broadcast %53 : f32 to vector<2x256xf32>
    %57 = arith.mulf %56, %51 : vector<2x256xf32>
    %58 = arith.addf %55, %57 : vector<2x256xf32>
    %59 = vector.broadcast %49 : vector<1x256xf32> to vector<2x256xf32>
    %60 = arith.mulf %59, %58 : vector<2x256xf32>
    %61 = arith.addf %48, %60 : vector<2x256xf32>
    %c3_22 = arith.constant 3 : index
    %c0_23 = arith.constant 0 : index
    %62 = vector.load %arg4[%c3_22, %c0_23] : memref<14x256xf32, #tpu.memory_space<vmem>>, vector<1x256xf32>
    %c21 = arith.constant 21 : index
    %63 = memref.load %arg2[%c21] : memref<98xf32, #tpu.memory_space<smem>>
    %c70 = arith.constant 70 : index
    %64 = memref.load %arg2[%c70] : memref<98xf32, #tpu.memory_space<smem>>
    %65 = vector.broadcast %63 : f32 to vector<2x256xf32>
    %66 = arith.mulf %65, %20 : vector<2x256xf32>
    %67 = vector.broadcast %64 : f32 to vector<2x256xf32>
    %68 = arith.mulf %67, %22 : vector<2x256xf32>
    %69 = arith.addf %66, %68 : vector<2x256xf32>
    %70 = vector.broadcast %62 : vector<1x256xf32> to vector<2x256xf32>
    %71 = arith.mulf %70, %69 : vector<2x256xf32>
    %72 = arith.addf %61, %71 : vector<2x256xf32>
    %c4 = arith.constant 4 : index
    %c0_24 = arith.constant 0 : index
    %73 = vector.load %arg4[%c4, %c0_24] : memref<14x256xf32, #tpu.memory_space<vmem>>, vector<1x256xf32>
    %c240_i32 = arith.constant 240 : i32
    %74 = tpu.dynamic_rotate %20 by %c240_i32 dim 1 : vector<2x256xf32>, i32 -> vector<2x256xf32>
    %c240_i32_25 = arith.constant 240 : i32
    %75 = tpu.dynamic_rotate %22 by %c240_i32_25 dim 1 : vector<2x256xf32>, i32 -> vector<2x256xf32>
    %c28 = arith.constant 28 : index
    %76 = memref.load %arg2[%c28] : memref<98xf32, #tpu.memory_space<smem>>
    %c77 = arith.constant 77 : index
    %77 = memref.load %arg2[%c77] : memref<98xf32, #tpu.memory_space<smem>>
    %78 = vector.broadcast %76 : f32 to vector<2x256xf32>
    %79 = arith.mulf %78, %74 : vector<2x256xf32>
    %80 = vector.broadcast %77 : f32 to vector<2x256xf32>
    %81 = arith.mulf %80, %75 : vector<2x256xf32>
    %82 = arith.addf %79, %81 : vector<2x256xf32>
    %83 = vector.broadcast %73 : vector<1x256xf32> to vector<2x256xf32>
    %84 = arith.mulf %83, %82 : vector<2x256xf32>
    %85 = arith.addf %72, %84 : vector<2x256xf32>
    %c5 = arith.constant 5 : index
    %c0_26 = arith.constant 0 : index
    %86 = vector.load %arg4[%c5, %c0_26] : memref<14x256xf32, #tpu.memory_space<vmem>>, vector<1x256xf32>
    %c224_i32 = arith.constant 224 : i32
    %87 = tpu.dynamic_rotate %20 by %c224_i32 dim 1 : vector<2x256xf32>, i32 -> vector<2x256xf32>
    %c224_i32_27 = arith.constant 224 : i32
    %88 = tpu.dynamic_rotate %22 by %c224_i32_27 dim 1 : vector<2x256xf32>, i32 -> vector<2x256xf32>
    %c35 = arith.constant 35 : index
    %89 = memref.load %arg2[%c35] : memref<98xf32, #tpu.memory_space<smem>>
    %c84 = arith.constant 84 : index
    %90 = memref.load %arg2[%c84] : memref<98xf32, #tpu.memory_space<smem>>
    %91 = vector.broadcast %89 : f32 to vector<2x256xf32>
    %92 = arith.mulf %91, %87 : vector<2x256xf32>
    %93 = vector.broadcast %90 : f32 to vector<2x256xf32>
    %94 = arith.mulf %93, %88 : vector<2x256xf32>
    %95 = arith.addf %92, %94 : vector<2x256xf32>
    %96 = vector.broadcast %86 : vector<1x256xf32> to vector<2x256xf32>
    %97 = arith.mulf %96, %95 : vector<2x256xf32>
    %98 = arith.addf %85, %97 : vector<2x256xf32>
    %c6 = arith.constant 6 : index
    %c0_28 = arith.constant 0 : index
    %99 = vector.load %arg4[%c6, %c0_28] : memref<14x256xf32, #tpu.memory_space<vmem>>, vector<1x256xf32>
    %c208_i32 = arith.constant 208 : i32
    %100 = tpu.dynamic_rotate %20 by %c208_i32 dim 1 : vector<2x256xf32>, i32 -> vector<2x256xf32>
    %c208_i32_29 = arith.constant 208 : i32
    %101 = tpu.dynamic_rotate %22 by %c208_i32_29 dim 1 : vector<2x256xf32>, i32 -> vector<2x256xf32>
    %c42 = arith.constant 42 : index
    %102 = memref.load %arg2[%c42] : memref<98xf32, #tpu.memory_space<smem>>
    %c91 = arith.constant 91 : index
    %103 = memref.load %arg2[%c91] : memref<98xf32, #tpu.memory_space<smem>>
    %104 = vector.broadcast %102 : f32 to vector<2x256xf32>
    %105 = arith.mulf %104, %100 : vector<2x256xf32>
    %106 = vector.broadcast %103 : f32 to vector<2x256xf32>
    %107 = arith.mulf %106, %101 : vector<2x256xf32>
    %108 = arith.addf %105, %107 : vector<2x256xf32>
    %109 = vector.broadcast %99 : vector<1x256xf32> to vector<2x256xf32>
    %110 = arith.mulf %109, %108 : vector<2x256xf32>
    %111 = arith.addf %98, %110 : vector<2x256xf32>
    %c8 = arith.constant 8 : index
    %c0_30 = arith.constant 0 : index
    %112 = vector.load %arg4[%c8, %c0_30] : memref<14x256xf32, #tpu.memory_space<vmem>>, vector<1x256xf32>
    %c2_i32 = arith.constant 2 : i32
    %113 = tpu.dynamic_rotate %12 by %c2_i32 dim 1 : vector<2x256xf32>, i32 -> vector<2x256xf32>
    %c2_i32_31 = arith.constant 2 : i32
    %114 = tpu.dynamic_rotate %13 by %c2_i32_31 dim 1 : vector<2x256xf32>, i32 -> vector<2x256xf32>
    %115 = vector.broadcast %112 : vector<1x256xf32> to vector<2x256xf32>
    %116 = arith.mulf %113, %115 : vector<2x256xf32>
    %117 = vector.broadcast %112 : vector<1x256xf32> to vector<2x256xf32>
    %118 = arith.mulf %114, %117 : vector<2x256xf32>
    %c0_32 = arith.constant 0 : index
    %c0_33 = arith.constant 0 : index
    %119 = vector.load %arg4[%c0_32, %c0_33] : memref<14x256xf32, #tpu.memory_space<vmem>>, vector<1x256xf32>
    %c48_i32_34 = arith.constant 48 : i32
    %120 = tpu.dynamic_rotate %116 by %c48_i32_34 dim 1 : vector<2x256xf32>, i32 -> vector<2x256xf32>
    %c48_i32_35 = arith.constant 48 : i32
    %121 = tpu.dynamic_rotate %118 by %c48_i32_35 dim 1 : vector<2x256xf32>, i32 -> vector<2x256xf32>
    %c1_36 = arith.constant 1 : index
    %122 = memref.load %arg2[%c1_36] : memref<98xf32, #tpu.memory_space<smem>>
    %c50 = arith.constant 50 : index
    %123 = memref.load %arg2[%c50] : memref<98xf32, #tpu.memory_space<smem>>
    %124 = vector.broadcast %122 : f32 to vector<2x256xf32>
    %125 = arith.mulf %124, %120 : vector<2x256xf32>
    %126 = vector.broadcast %123 : f32 to vector<2x256xf32>
    %127 = arith.mulf %126, %121 : vector<2x256xf32>
    %128 = arith.addf %125, %127 : vector<2x256xf32>
    %129 = vector.broadcast %119 : vector<1x256xf32> to vector<2x256xf32>
    %130 = arith.mulf %129, %128 : vector<2x256xf32>
    %131 = arith.addf %111, %130 : vector<2x256xf32>
    %c1_37 = arith.constant 1 : index
    %c0_38 = arith.constant 0 : index
    %132 = vector.load %arg4[%c1_37, %c0_38] : memref<14x256xf32, #tpu.memory_space<vmem>>, vector<1x256xf32>
    %c32_i32_39 = arith.constant 32 : i32
    %133 = tpu.dynamic_rotate %116 by %c32_i32_39 dim 1 : vector<2x256xf32>, i32 -> vector<2x256xf32>
    %c32_i32_40 = arith.constant 32 : i32
    %134 = tpu.dynamic_rotate %118 by %c32_i32_40 dim 1 : vector<2x256xf32>, i32 -> vector<2x256xf32>
    %c8_41 = arith.constant 8 : index
    %135 = memref.load %arg2[%c8_41] : memref<98xf32, #tpu.memory_space<smem>>
    %c57 = arith.constant 57 : index
    %136 = memref.load %arg2[%c57] : memref<98xf32, #tpu.memory_space<smem>>
    %137 = vector.broadcast %135 : f32 to vector<2x256xf32>
    %138 = arith.mulf %137, %133 : vector<2x256xf32>
    %139 = vector.broadcast %136 : f32 to vector<2x256xf32>
    %140 = arith.mulf %139, %134 : vector<2x256xf32>
    %141 = arith.addf %138, %140 : vector<2x256xf32>
    %142 = vector.broadcast %132 : vector<1x256xf32> to vector<2x256xf32>
    %143 = arith.mulf %142, %141 : vector<2x256xf32>
    %144 = arith.addf %131, %143 : vector<2x256xf32>
    %c2_42 = arith.constant 2 : index
    %c0_43 = arith.constant 0 : index
    %145 = vector.load %arg4[%c2_42, %c0_43] : memref<14x256xf32, #tpu.memory_space<vmem>>, vector<1x256xf32>
    %c16_i32_44 = arith.constant 16 : i32
    %146 = tpu.dynamic_rotate %116 by %c16_i32_44 dim 1 : vector<2x256xf32>, i32 -> vector<2x256xf32>
    %c16_i32_45 = arith.constant 16 : i32
    %147 = tpu.dynamic_rotate %118 by %c16_i32_45 dim 1 : vector<2x256xf32>, i32 -> vector<2x256xf32>
    %c15 = arith.constant 15 : index
    %148 = memref.load %arg2[%c15] : memref<98xf32, #tpu.memory_space<smem>>
    %c64 = arith.constant 64 : index
    %149 = memref.load %arg2[%c64] : memref<98xf32, #tpu.memory_space<smem>>
    %150 = vector.broadcast %148 : f32 to vector<2x256xf32>
    %151 = arith.mulf %150, %146 : vector<2x256xf32>
    %152 = vector.broadcast %149 : f32 to vector<2x256xf32>
    %153 = arith.mulf %152, %147 : vector<2x256xf32>
    %154 = arith.addf %151, %153 : vector<2x256xf32>
    %155 = vector.broadcast %145 : vector<1x256xf32> to vector<2x256xf32>
    %156 = arith.mulf %155, %154 : vector<2x256xf32>
    %157 = arith.addf %144, %156 : vector<2x256xf32>
    %c3_46 = arith.constant 3 : index
    %c0_47 = arith.constant 0 : index
    %158 = vector.load %arg4[%c3_46, %c0_47] : memref<14x256xf32, #tpu.memory_space<vmem>>, vector<1x256xf32>
    %c22 = arith.constant 22 : index
    %159 = memref.load %arg2[%c22] : memref<98xf32, #tpu.memory_space<smem>>
    %c71 = arith.constant 71 : index
    %160 = memref.load %arg2[%c71] : memref<98xf32, #tpu.memory_space<smem>>
    %161 = vector.broadcast %159 : f32 to vector<2x256xf32>
    %162 = arith.mulf %161, %116 : vector<2x256xf32>
    %163 = vector.broadcast %160 : f32 to vector<2x256xf32>
    %164 = arith.mulf %163, %118 : vector<2x256xf32>
    %165 = arith.addf %162, %164 : vector<2x256xf32>
    %166 = vector.broadcast %158 : vector<1x256xf32> to vector<2x256xf32>
    %167 = arith.mulf %166, %165 : vector<2x256xf32>
    %168 = arith.addf %157, %167 : vector<2x256xf32>
    %c4_48 = arith.constant 4 : index
    %c0_49 = arith.constant 0 : index
    %169 = vector.load %arg4[%c4_48, %c0_49] : memref<14x256xf32, #tpu.memory_space<vmem>>, vector<1x256xf32>
    %c240_i32_50 = arith.constant 240 : i32
    %170 = tpu.dynamic_rotate %116 by %c240_i32_50 dim 1 : vector<2x256xf32>, i32 -> vector<2x256xf32>
    %c240_i32_51 = arith.constant 240 : i32
    %171 = tpu.dynamic_rotate %118 by %c240_i32_51 dim 1 : vector<2x256xf32>, i32 -> vector<2x256xf32>
    %c29 = arith.constant 29 : index
    %172 = memref.load %arg2[%c29] : memref<98xf32, #tpu.memory_space<smem>>
    %c78 = arith.constant 78 : index
    %173 = memref.load %arg2[%c78] : memref<98xf32, #tpu.memory_space<smem>>
    %174 = vector.broadcast %172 : f32 to vector<2x256xf32>
    %175 = arith.mulf %174, %170 : vector<2x256xf32>
    %176 = vector.broadcast %173 : f32 to vector<2x256xf32>
    %177 = arith.mulf %176, %171 : vector<2x256xf32>
    %178 = arith.addf %175, %177 : vector<2x256xf32>
    %179 = vector.broadcast %169 : vector<1x256xf32> to vector<2x256xf32>
    %180 = arith.mulf %179, %178 : vector<2x256xf32>
    %181 = arith.addf %168, %180 : vector<2x256xf32>
    %c5_52 = arith.constant 5 : index
    %c0_53 = arith.constant 0 : index
    %182 = vector.load %arg4[%c5_52, %c0_53] : memref<14x256xf32, #tpu.memory_space<vmem>>, vector<1x256xf32>
    %c224_i32_54 = arith.constant 224 : i32
    %183 = tpu.dynamic_rotate %116 by %c224_i32_54 dim 1 : vector<2x256xf32>, i32 -> vector<2x256xf32>
    %c224_i32_55 = arith.constant 224 : i32
    %184 = tpu.dynamic_rotate %118 by %c224_i32_55 dim 1 : vector<2x256xf32>, i32 -> vector<2x256xf32>
    %c36 = arith.constant 36 : index
    %185 = memref.load %arg2[%c36] : memref<98xf32, #tpu.memory_space<smem>>
    %c85 = arith.constant 85 : index
    %186 = memref.load %arg2[%c85] : memref<98xf32, #tpu.memory_space<smem>>
    %187 = vector.broadcast %185 : f32 to vector<2x256xf32>
    %188 = arith.mulf %187, %183 : vector<2x256xf32>
    %189 = vector.broadcast %186 : f32 to vector<2x256xf32>
    %190 = arith.mulf %189, %184 : vector<2x256xf32>
    %191 = arith.addf %188, %190 : vector<2x256xf32>
    %192 = vector.broadcast %182 : vector<1x256xf32> to vector<2x256xf32>
    %193 = arith.mulf %192, %191 : vector<2x256xf32>
    %194 = arith.addf %181, %193 : vector<2x256xf32>
    %c6_56 = arith.constant 6 : index
    %c0_57 = arith.constant 0 : index
    %195 = vector.load %arg4[%c6_56, %c0_57] : memref<14x256xf32, #tpu.memory_space<vmem>>, vector<1x256xf32>
    %c208_i32_58 = arith.constant 208 : i32
    %196 = tpu.dynamic_rotate %116 by %c208_i32_58 dim 1 : vector<2x256xf32>, i32 -> vector<2x256xf32>
    %c208_i32_59 = arith.constant 208 : i32
    %197 = tpu.dynamic_rotate %118 by %c208_i32_59 dim 1 : vector<2x256xf32>, i32 -> vector<2x256xf32>
    %c43 = arith.constant 43 : index
    %198 = memref.load %arg2[%c43] : memref<98xf32, #tpu.memory_space<smem>>
    %c92 = arith.constant 92 : index
    %199 = memref.load %arg2[%c92] : memref<98xf32, #tpu.memory_space<smem>>
    %200 = vector.broadcast %198 : f32 to vector<2x256xf32>
    %201 = arith.mulf %200, %196 : vector<2x256xf32>
    %202 = vector.broadcast %199 : f32 to vector<2x256xf32>
    %203 = arith.mulf %202, %197 : vector<2x256xf32>
    %204 = arith.addf %201, %203 : vector<2x256xf32>
    %205 = vector.broadcast %195 : vector<1x256xf32> to vector<2x256xf32>
    %206 = arith.mulf %205, %204 : vector<2x256xf32>
    %207 = arith.addf %194, %206 : vector<2x256xf32>
    %c9 = arith.constant 9 : index
    %c0_60 = arith.constant 0 : index
    %208 = vector.load %arg4[%c9, %c0_60] : memref<14x256xf32, #tpu.memory_space<vmem>>, vector<1x256xf32>
    %c1_i32 = arith.constant 1 : i32
    %209 = tpu.dynamic_rotate %12 by %c1_i32 dim 1 : vector<2x256xf32>, i32 -> vector<2x256xf32>
    %c1_i32_61 = arith.constant 1 : i32
    %210 = tpu.dynamic_rotate %13 by %c1_i32_61 dim 1 : vector<2x256xf32>, i32 -> vector<2x256xf32>
    %211 = vector.broadcast %208 : vector<1x256xf32> to vector<2x256xf32>
    %212 = arith.mulf %209, %211 : vector<2x256xf32>
    %213 = vector.broadcast %208 : vector<1x256xf32> to vector<2x256xf32>
    %214 = arith.mulf %210, %213 : vector<2x256xf32>
    %c0_62 = arith.constant 0 : index
    %c0_63 = arith.constant 0 : index
    %215 = vector.load %arg4[%c0_62, %c0_63] : memref<14x256xf32, #tpu.memory_space<vmem>>, vector<1x256xf32>
    %c48_i32_64 = arith.constant 48 : i32
    %216 = tpu.dynamic_rotate %212 by %c48_i32_64 dim 1 : vector<2x256xf32>, i32 -> vector<2x256xf32>
    %c48_i32_65 = arith.constant 48 : i32
    %217 = tpu.dynamic_rotate %214 by %c48_i32_65 dim 1 : vector<2x256xf32>, i32 -> vector<2x256xf32>
    %c2_66 = arith.constant 2 : index
    %218 = memref.load %arg2[%c2_66] : memref<98xf32, #tpu.memory_space<smem>>
    %c51 = arith.constant 51 : index
    %219 = memref.load %arg2[%c51] : memref<98xf32, #tpu.memory_space<smem>>
    %220 = vector.broadcast %218 : f32 to vector<2x256xf32>
    %221 = arith.mulf %220, %216 : vector<2x256xf32>
    %222 = vector.broadcast %219 : f32 to vector<2x256xf32>
    %223 = arith.mulf %222, %217 : vector<2x256xf32>
    %224 = arith.addf %221, %223 : vector<2x256xf32>
    %225 = vector.broadcast %215 : vector<1x256xf32> to vector<2x256xf32>
    %226 = arith.mulf %225, %224 : vector<2x256xf32>
    %227 = arith.addf %207, %226 : vector<2x256xf32>
    %c1_67 = arith.constant 1 : index
    %c0_68 = arith.constant 0 : index
    %228 = vector.load %arg4[%c1_67, %c0_68] : memref<14x256xf32, #tpu.memory_space<vmem>>, vector<1x256xf32>
    %c32_i32_69 = arith.constant 32 : i32
    %229 = tpu.dynamic_rotate %212 by %c32_i32_69 dim 1 : vector<2x256xf32>, i32 -> vector<2x256xf32>
    %c32_i32_70 = arith.constant 32 : i32
    %230 = tpu.dynamic_rotate %214 by %c32_i32_70 dim 1 : vector<2x256xf32>, i32 -> vector<2x256xf32>
    %c9_71 = arith.constant 9 : index
    %231 = memref.load %arg2[%c9_71] : memref<98xf32, #tpu.memory_space<smem>>
    %c58 = arith.constant 58 : index
    %232 = memref.load %arg2[%c58] : memref<98xf32, #tpu.memory_space<smem>>
    %233 = vector.broadcast %231 : f32 to vector<2x256xf32>
    %234 = arith.mulf %233, %229 : vector<2x256xf32>
    %235 = vector.broadcast %232 : f32 to vector<2x256xf32>
    %236 = arith.mulf %235, %230 : vector<2x256xf32>
    %237 = arith.addf %234, %236 : vector<2x256xf32>
    %238 = vector.broadcast %228 : vector<1x256xf32> to vector<2x256xf32>
    %239 = arith.mulf %238, %237 : vector<2x256xf32>
    %240 = arith.addf %227, %239 : vector<2x256xf32>
    %c2_72 = arith.constant 2 : index
    %c0_73 = arith.constant 0 : index
    %241 = vector.load %arg4[%c2_72, %c0_73] : memref<14x256xf32, #tpu.memory_space<vmem>>, vector<1x256xf32>
    %c16_i32_74 = arith.constant 16 : i32
    %242 = tpu.dynamic_rotate %212 by %c16_i32_74 dim 1 : vector<2x256xf32>, i32 -> vector<2x256xf32>
    %c16_i32_75 = arith.constant 16 : i32
    %243 = tpu.dynamic_rotate %214 by %c16_i32_75 dim 1 : vector<2x256xf32>, i32 -> vector<2x256xf32>
    %c16 = arith.constant 16 : index
    %244 = memref.load %arg2[%c16] : memref<98xf32, #tpu.memory_space<smem>>
    %c65 = arith.constant 65 : index
    %245 = memref.load %arg2[%c65] : memref<98xf32, #tpu.memory_space<smem>>
    %246 = vector.broadcast %244 : f32 to vector<2x256xf32>
    %247 = arith.mulf %246, %242 : vector<2x256xf32>
    %248 = vector.broadcast %245 : f32 to vector<2x256xf32>
    %249 = arith.mulf %248, %243 : vector<2x256xf32>
    %250 = arith.addf %247, %249 : vector<2x256xf32>
    %251 = vector.broadcast %241 : vector<1x256xf32> to vector<2x256xf32>
    %252 = arith.mulf %251, %250 : vector<2x256xf32>
    %253 = arith.addf %240, %252 : vector<2x256xf32>
    %c3_76 = arith.constant 3 : index
    %c0_77 = arith.constant 0 : index
    %254 = vector.load %arg4[%c3_76, %c0_77] : memref<14x256xf32, #tpu.memory_space<vmem>>, vector<1x256xf32>
    %c23 = arith.constant 23 : index
    %255 = memref.load %arg2[%c23] : memref<98xf32, #tpu.memory_space<smem>>
    %c72 = arith.constant 72 : index
    %256 = memref.load %arg2[%c72] : memref<98xf32, #tpu.memory_space<smem>>
    %257 = vector.broadcast %255 : f32 to vector<2x256xf32>
    %258 = arith.mulf %257, %212 : vector<2x256xf32>
    %259 = vector.broadcast %256 : f32 to vector<2x256xf32>
    %260 = arith.mulf %259, %214 : vector<2x256xf32>
    %261 = arith.addf %258, %260 : vector<2x256xf32>
    %262 = vector.broadcast %254 : vector<1x256xf32> to vector<2x256xf32>
    %263 = arith.mulf %262, %261 : vector<2x256xf32>
    %264 = arith.addf %253, %263 : vector<2x256xf32>
    %c4_78 = arith.constant 4 : index
    %c0_79 = arith.constant 0 : index
    %265 = vector.load %arg4[%c4_78, %c0_79] : memref<14x256xf32, #tpu.memory_space<vmem>>, vector<1x256xf32>
    %c240_i32_80 = arith.constant 240 : i32
    %266 = tpu.dynamic_rotate %212 by %c240_i32_80 dim 1 : vector<2x256xf32>, i32 -> vector<2x256xf32>
    %c240_i32_81 = arith.constant 240 : i32
    %267 = tpu.dynamic_rotate %214 by %c240_i32_81 dim 1 : vector<2x256xf32>, i32 -> vector<2x256xf32>
    %c30 = arith.constant 30 : index
    %268 = memref.load %arg2[%c30] : memref<98xf32, #tpu.memory_space<smem>>
    %c79 = arith.constant 79 : index
    %269 = memref.load %arg2[%c79] : memref<98xf32, #tpu.memory_space<smem>>
    %270 = vector.broadcast %268 : f32 to vector<2x256xf32>
    %271 = arith.mulf %270, %266 : vector<2x256xf32>
    %272 = vector.broadcast %269 : f32 to vector<2x256xf32>
    %273 = arith.mulf %272, %267 : vector<2x256xf32>
    %274 = arith.addf %271, %273 : vector<2x256xf32>
    %275 = vector.broadcast %265 : vector<1x256xf32> to vector<2x256xf32>
    %276 = arith.mulf %275, %274 : vector<2x256xf32>
    %277 = arith.addf %264, %276 : vector<2x256xf32>
    %c5_82 = arith.constant 5 : index
    %c0_83 = arith.constant 0 : index
    %278 = vector.load %arg4[%c5_82, %c0_83] : memref<14x256xf32, #tpu.memory_space<vmem>>, vector<1x256xf32>
    %c224_i32_84 = arith.constant 224 : i32
    %279 = tpu.dynamic_rotate %212 by %c224_i32_84 dim 1 : vector<2x256xf32>, i32 -> vector<2x256xf32>
    %c224_i32_85 = arith.constant 224 : i32
    %280 = tpu.dynamic_rotate %214 by %c224_i32_85 dim 1 : vector<2x256xf32>, i32 -> vector<2x256xf32>
    %c37 = arith.constant 37 : index
    %281 = memref.load %arg2[%c37] : memref<98xf32, #tpu.memory_space<smem>>
    %c86 = arith.constant 86 : index
    %282 = memref.load %arg2[%c86] : memref<98xf32, #tpu.memory_space<smem>>
    %283 = vector.broadcast %281 : f32 to vector<2x256xf32>
    %284 = arith.mulf %283, %279 : vector<2x256xf32>
    %285 = vector.broadcast %282 : f32 to vector<2x256xf32>
    %286 = arith.mulf %285, %280 : vector<2x256xf32>
    %287 = arith.addf %284, %286 : vector<2x256xf32>
    %288 = vector.broadcast %278 : vector<1x256xf32> to vector<2x256xf32>
    %289 = arith.mulf %288, %287 : vector<2x256xf32>
    %290 = arith.addf %277, %289 : vector<2x256xf32>
    %c6_86 = arith.constant 6 : index
    %c0_87 = arith.constant 0 : index
    %291 = vector.load %arg4[%c6_86, %c0_87] : memref<14x256xf32, #tpu.memory_space<vmem>>, vector<1x256xf32>
    %c208_i32_88 = arith.constant 208 : i32
    %292 = tpu.dynamic_rotate %212 by %c208_i32_88 dim 1 : vector<2x256xf32>, i32 -> vector<2x256xf32>
    %c208_i32_89 = arith.constant 208 : i32
    %293 = tpu.dynamic_rotate %214 by %c208_i32_89 dim 1 : vector<2x256xf32>, i32 -> vector<2x256xf32>
    %c44 = arith.constant 44 : index
    %294 = memref.load %arg2[%c44] : memref<98xf32, #tpu.memory_space<smem>>
    %c93 = arith.constant 93 : index
    %295 = memref.load %arg2[%c93] : memref<98xf32, #tpu.memory_space<smem>>
    %296 = vector.broadcast %294 : f32 to vector<2x256xf32>
    %297 = arith.mulf %296, %292 : vector<2x256xf32>
    %298 = vector.broadcast %295 : f32 to vector<2x256xf32>
    %299 = arith.mulf %298, %293 : vector<2x256xf32>
    %300 = arith.addf %297, %299 : vector<2x256xf32>
    %301 = vector.broadcast %291 : vector<1x256xf32> to vector<2x256xf32>
    %302 = arith.mulf %301, %300 : vector<2x256xf32>
    %303 = arith.addf %290, %302 : vector<2x256xf32>
    %c10 = arith.constant 10 : index
    %c0_90 = arith.constant 0 : index
    %304 = vector.load %arg4[%c10, %c0_90] : memref<14x256xf32, #tpu.memory_space<vmem>>, vector<1x256xf32>
    %305 = vector.broadcast %304 : vector<1x256xf32> to vector<2x256xf32>
    %306 = arith.mulf %12, %305 : vector<2x256xf32>
    %307 = vector.broadcast %304 : vector<1x256xf32> to vector<2x256xf32>
    %308 = arith.mulf %13, %307 : vector<2x256xf32>
    %c0_91 = arith.constant 0 : index
    %c0_92 = arith.constant 0 : index
    %309 = vector.load %arg4[%c0_91, %c0_92] : memref<14x256xf32, #tpu.memory_space<vmem>>, vector<1x256xf32>
    %c48_i32_93 = arith.constant 48 : i32
    %310 = tpu.dynamic_rotate %306 by %c48_i32_93 dim 1 : vector<2x256xf32>, i32 -> vector<2x256xf32>
    %c48_i32_94 = arith.constant 48 : i32
    %311 = tpu.dynamic_rotate %308 by %c48_i32_94 dim 1 : vector<2x256xf32>, i32 -> vector<2x256xf32>
    %c3_95 = arith.constant 3 : index
    %312 = memref.load %arg2[%c3_95] : memref<98xf32, #tpu.memory_space<smem>>
    %c52 = arith.constant 52 : index
    %313 = memref.load %arg2[%c52] : memref<98xf32, #tpu.memory_space<smem>>
    %314 = vector.broadcast %312 : f32 to vector<2x256xf32>
    %315 = arith.mulf %314, %310 : vector<2x256xf32>
    %316 = vector.broadcast %313 : f32 to vector<2x256xf32>
    %317 = arith.mulf %316, %311 : vector<2x256xf32>
    %318 = arith.addf %315, %317 : vector<2x256xf32>
    %319 = vector.broadcast %309 : vector<1x256xf32> to vector<2x256xf32>
    %320 = arith.mulf %319, %318 : vector<2x256xf32>
    %321 = arith.addf %303, %320 : vector<2x256xf32>
    %c1_96 = arith.constant 1 : index
    %c0_97 = arith.constant 0 : index
    %322 = vector.load %arg4[%c1_96, %c0_97] : memref<14x256xf32, #tpu.memory_space<vmem>>, vector<1x256xf32>
    %c32_i32_98 = arith.constant 32 : i32
    %323 = tpu.dynamic_rotate %306 by %c32_i32_98 dim 1 : vector<2x256xf32>, i32 -> vector<2x256xf32>
    %c32_i32_99 = arith.constant 32 : i32
    %324 = tpu.dynamic_rotate %308 by %c32_i32_99 dim 1 : vector<2x256xf32>, i32 -> vector<2x256xf32>
    %c10_100 = arith.constant 10 : index
    %325 = memref.load %arg2[%c10_100] : memref<98xf32, #tpu.memory_space<smem>>
    %c59 = arith.constant 59 : index
    %326 = memref.load %arg2[%c59] : memref<98xf32, #tpu.memory_space<smem>>
    %327 = vector.broadcast %325 : f32 to vector<2x256xf32>
    %328 = arith.mulf %327, %323 : vector<2x256xf32>
    %329 = vector.broadcast %326 : f32 to vector<2x256xf32>
    %330 = arith.mulf %329, %324 : vector<2x256xf32>
    %331 = arith.addf %328, %330 : vector<2x256xf32>
    %332 = vector.broadcast %322 : vector<1x256xf32> to vector<2x256xf32>
    %333 = arith.mulf %332, %331 : vector<2x256xf32>
    %334 = arith.addf %321, %333 : vector<2x256xf32>
    %c2_101 = arith.constant 2 : index
    %c0_102 = arith.constant 0 : index
    %335 = vector.load %arg4[%c2_101, %c0_102] : memref<14x256xf32, #tpu.memory_space<vmem>>, vector<1x256xf32>
    %c16_i32_103 = arith.constant 16 : i32
    %336 = tpu.dynamic_rotate %306 by %c16_i32_103 dim 1 : vector<2x256xf32>, i32 -> vector<2x256xf32>
    %c16_i32_104 = arith.constant 16 : i32
    %337 = tpu.dynamic_rotate %308 by %c16_i32_104 dim 1 : vector<2x256xf32>, i32 -> vector<2x256xf32>
    %c17 = arith.constant 17 : index
    %338 = memref.load %arg2[%c17] : memref<98xf32, #tpu.memory_space<smem>>
    %c66 = arith.constant 66 : index
    %339 = memref.load %arg2[%c66] : memref<98xf32, #tpu.memory_space<smem>>
    %340 = vector.broadcast %338 : f32 to vector<2x256xf32>
    %341 = arith.mulf %340, %336 : vector<2x256xf32>
    %342 = vector.broadcast %339 : f32 to vector<2x256xf32>
    %343 = arith.mulf %342, %337 : vector<2x256xf32>
    %344 = arith.addf %341, %343 : vector<2x256xf32>
    %345 = vector.broadcast %335 : vector<1x256xf32> to vector<2x256xf32>
    %346 = arith.mulf %345, %344 : vector<2x256xf32>
    %347 = arith.addf %334, %346 : vector<2x256xf32>
    %c3_105 = arith.constant 3 : index
    %c0_106 = arith.constant 0 : index
    %348 = vector.load %arg4[%c3_105, %c0_106] : memref<14x256xf32, #tpu.memory_space<vmem>>, vector<1x256xf32>
    %c24 = arith.constant 24 : index
    %349 = memref.load %arg2[%c24] : memref<98xf32, #tpu.memory_space<smem>>
    %c73 = arith.constant 73 : index
    %350 = memref.load %arg2[%c73] : memref<98xf32, #tpu.memory_space<smem>>
    %351 = vector.broadcast %349 : f32 to vector<2x256xf32>
    %352 = arith.mulf %351, %306 : vector<2x256xf32>
    %353 = vector.broadcast %350 : f32 to vector<2x256xf32>
    %354 = arith.mulf %353, %308 : vector<2x256xf32>
    %355 = arith.addf %352, %354 : vector<2x256xf32>
    %356 = vector.broadcast %348 : vector<1x256xf32> to vector<2x256xf32>
    %357 = arith.mulf %356, %355 : vector<2x256xf32>
    %358 = arith.addf %347, %357 : vector<2x256xf32>
    %c4_107 = arith.constant 4 : index
    %c0_108 = arith.constant 0 : index
    %359 = vector.load %arg4[%c4_107, %c0_108] : memref<14x256xf32, #tpu.memory_space<vmem>>, vector<1x256xf32>
    %c240_i32_109 = arith.constant 240 : i32
    %360 = tpu.dynamic_rotate %306 by %c240_i32_109 dim 1 : vector<2x256xf32>, i32 -> vector<2x256xf32>
    %c240_i32_110 = arith.constant 240 : i32
    %361 = tpu.dynamic_rotate %308 by %c240_i32_110 dim 1 : vector<2x256xf32>, i32 -> vector<2x256xf32>
    %c31 = arith.constant 31 : index
    %362 = memref.load %arg2[%c31] : memref<98xf32, #tpu.memory_space<smem>>
    %c80 = arith.constant 80 : index
    %363 = memref.load %arg2[%c80] : memref<98xf32, #tpu.memory_space<smem>>
    %364 = vector.broadcast %362 : f32 to vector<2x256xf32>
    %365 = arith.mulf %364, %360 : vector<2x256xf32>
    %366 = vector.broadcast %363 : f32 to vector<2x256xf32>
    %367 = arith.mulf %366, %361 : vector<2x256xf32>
    %368 = arith.addf %365, %367 : vector<2x256xf32>
    %369 = vector.broadcast %359 : vector<1x256xf32> to vector<2x256xf32>
    %370 = arith.mulf %369, %368 : vector<2x256xf32>
    %371 = arith.addf %358, %370 : vector<2x256xf32>
    %c5_111 = arith.constant 5 : index
    %c0_112 = arith.constant 0 : index
    %372 = vector.load %arg4[%c5_111, %c0_112] : memref<14x256xf32, #tpu.memory_space<vmem>>, vector<1x256xf32>
    %c224_i32_113 = arith.constant 224 : i32
    %373 = tpu.dynamic_rotate %306 by %c224_i32_113 dim 1 : vector<2x256xf32>, i32 -> vector<2x256xf32>
    %c224_i32_114 = arith.constant 224 : i32
    %374 = tpu.dynamic_rotate %308 by %c224_i32_114 dim 1 : vector<2x256xf32>, i32 -> vector<2x256xf32>
    %c38 = arith.constant 38 : index
    %375 = memref.load %arg2[%c38] : memref<98xf32, #tpu.memory_space<smem>>
    %c87 = arith.constant 87 : index
    %376 = memref.load %arg2[%c87] : memref<98xf32, #tpu.memory_space<smem>>
    %377 = vector.broadcast %375 : f32 to vector<2x256xf32>
    %378 = arith.mulf %377, %373 : vector<2x256xf32>
    %379 = vector.broadcast %376 : f32 to vector<2x256xf32>
    %380 = arith.mulf %379, %374 : vector<2x256xf32>
    %381 = arith.addf %378, %380 : vector<2x256xf32>
    %382 = vector.broadcast %372 : vector<1x256xf32> to vector<2x256xf32>
    %383 = arith.mulf %382, %381 : vector<2x256xf32>
    %384 = arith.addf %371, %383 : vector<2x256xf32>
    %c6_115 = arith.constant 6 : index
    %c0_116 = arith.constant 0 : index
    %385 = vector.load %arg4[%c6_115, %c0_116] : memref<14x256xf32, #tpu.memory_space<vmem>>, vector<1x256xf32>
    %c208_i32_117 = arith.constant 208 : i32
    %386 = tpu.dynamic_rotate %306 by %c208_i32_117 dim 1 : vector<2x256xf32>, i32 -> vector<2x256xf32>
    %c208_i32_118 = arith.constant 208 : i32
    %387 = tpu.dynamic_rotate %308 by %c208_i32_118 dim 1 : vector<2x256xf32>, i32 -> vector<2x256xf32>
    %c45 = arith.constant 45 : index
    %388 = memref.load %arg2[%c45] : memref<98xf32, #tpu.memory_space<smem>>
    %c94 = arith.constant 94 : index
    %389 = memref.load %arg2[%c94] : memref<98xf32, #tpu.memory_space<smem>>
    %390 = vector.broadcast %388 : f32 to vector<2x256xf32>
    %391 = arith.mulf %390, %386 : vector<2x256xf32>
    %392 = vector.broadcast %389 : f32 to vector<2x256xf32>
    %393 = arith.mulf %392, %387 : vector<2x256xf32>
    %394 = arith.addf %391, %393 : vector<2x256xf32>
    %395 = vector.broadcast %385 : vector<1x256xf32> to vector<2x256xf32>
    %396 = arith.mulf %395, %394 : vector<2x256xf32>
    %397 = arith.addf %384, %396 : vector<2x256xf32>
    %c11 = arith.constant 11 : index
    %c0_119 = arith.constant 0 : index
    %398 = vector.load %arg4[%c11, %c0_119] : memref<14x256xf32, #tpu.memory_space<vmem>>, vector<1x256xf32>
    %c255_i32 = arith.constant 255 : i32
    %399 = tpu.dynamic_rotate %12 by %c255_i32 dim 1 : vector<2x256xf32>, i32 -> vector<2x256xf32>
    %c255_i32_120 = arith.constant 255 : i32
    %400 = tpu.dynamic_rotate %13 by %c255_i32_120 dim 1 : vector<2x256xf32>, i32 -> vector<2x256xf32>
    %401 = vector.broadcast %398 : vector<1x256xf32> to vector<2x256xf32>
    %402 = arith.mulf %399, %401 : vector<2x256xf32>
    %403 = vector.broadcast %398 : vector<1x256xf32> to vector<2x256xf32>
    %404 = arith.mulf %400, %403 : vector<2x256xf32>
    %c0_121 = arith.constant 0 : index
    %c0_122 = arith.constant 0 : index
    %405 = vector.load %arg4[%c0_121, %c0_122] : memref<14x256xf32, #tpu.memory_space<vmem>>, vector<1x256xf32>
    %c48_i32_123 = arith.constant 48 : i32
    %406 = tpu.dynamic_rotate %402 by %c48_i32_123 dim 1 : vector<2x256xf32>, i32 -> vector<2x256xf32>
    %c48_i32_124 = arith.constant 48 : i32
    %407 = tpu.dynamic_rotate %404 by %c48_i32_124 dim 1 : vector<2x256xf32>, i32 -> vector<2x256xf32>
    %c4_125 = arith.constant 4 : index
    %408 = memref.load %arg2[%c4_125] : memref<98xf32, #tpu.memory_space<smem>>
    %c53 = arith.constant 53 : index
    %409 = memref.load %arg2[%c53] : memref<98xf32, #tpu.memory_space<smem>>
    %410 = vector.broadcast %408 : f32 to vector<2x256xf32>
    %411 = arith.mulf %410, %406 : vector<2x256xf32>
    %412 = vector.broadcast %409 : f32 to vector<2x256xf32>
    %413 = arith.mulf %412, %407 : vector<2x256xf32>
    %414 = arith.addf %411, %413 : vector<2x256xf32>
    %415 = vector.broadcast %405 : vector<1x256xf32> to vector<2x256xf32>
    %416 = arith.mulf %415, %414 : vector<2x256xf32>
    %417 = arith.addf %397, %416 : vector<2x256xf32>
    %c1_126 = arith.constant 1 : index
    %c0_127 = arith.constant 0 : index
    %418 = vector.load %arg4[%c1_126, %c0_127] : memref<14x256xf32, #tpu.memory_space<vmem>>, vector<1x256xf32>
    %c32_i32_128 = arith.constant 32 : i32
    %419 = tpu.dynamic_rotate %402 by %c32_i32_128 dim 1 : vector<2x256xf32>, i32 -> vector<2x256xf32>
    %c32_i32_129 = arith.constant 32 : i32
    %420 = tpu.dynamic_rotate %404 by %c32_i32_129 dim 1 : vector<2x256xf32>, i32 -> vector<2x256xf32>
    %c11_130 = arith.constant 11 : index
    %421 = memref.load %arg2[%c11_130] : memref<98xf32, #tpu.memory_space<smem>>
    %c60 = arith.constant 60 : index
    %422 = memref.load %arg2[%c60] : memref<98xf32, #tpu.memory_space<smem>>
    %423 = vector.broadcast %421 : f32 to vector<2x256xf32>
    %424 = arith.mulf %423, %419 : vector<2x256xf32>
    %425 = vector.broadcast %422 : f32 to vector<2x256xf32>
    %426 = arith.mulf %425, %420 : vector<2x256xf32>
    %427 = arith.addf %424, %426 : vector<2x256xf32>
    %428 = vector.broadcast %418 : vector<1x256xf32> to vector<2x256xf32>
    %429 = arith.mulf %428, %427 : vector<2x256xf32>
    %430 = arith.addf %417, %429 : vector<2x256xf32>
    %c2_131 = arith.constant 2 : index
    %c0_132 = arith.constant 0 : index
    %431 = vector.load %arg4[%c2_131, %c0_132] : memref<14x256xf32, #tpu.memory_space<vmem>>, vector<1x256xf32>
    %c16_i32_133 = arith.constant 16 : i32
    %432 = tpu.dynamic_rotate %402 by %c16_i32_133 dim 1 : vector<2x256xf32>, i32 -> vector<2x256xf32>
    %c16_i32_134 = arith.constant 16 : i32
    %433 = tpu.dynamic_rotate %404 by %c16_i32_134 dim 1 : vector<2x256xf32>, i32 -> vector<2x256xf32>
    %c18 = arith.constant 18 : index
    %434 = memref.load %arg2[%c18] : memref<98xf32, #tpu.memory_space<smem>>
    %c67 = arith.constant 67 : index
    %435 = memref.load %arg2[%c67] : memref<98xf32, #tpu.memory_space<smem>>
    %436 = vector.broadcast %434 : f32 to vector<2x256xf32>
    %437 = arith.mulf %436, %432 : vector<2x256xf32>
    %438 = vector.broadcast %435 : f32 to vector<2x256xf32>
    %439 = arith.mulf %438, %433 : vector<2x256xf32>
    %440 = arith.addf %437, %439 : vector<2x256xf32>
    %441 = vector.broadcast %431 : vector<1x256xf32> to vector<2x256xf32>
    %442 = arith.mulf %441, %440 : vector<2x256xf32>
    %443 = arith.addf %430, %442 : vector<2x256xf32>
    %c3_135 = arith.constant 3 : index
    %c0_136 = arith.constant 0 : index
    %444 = vector.load %arg4[%c3_135, %c0_136] : memref<14x256xf32, #tpu.memory_space<vmem>>, vector<1x256xf32>
    %c25 = arith.constant 25 : index
    %445 = memref.load %arg2[%c25] : memref<98xf32, #tpu.memory_space<smem>>
    %c74 = arith.constant 74 : index
    %446 = memref.load %arg2[%c74] : memref<98xf32, #tpu.memory_space<smem>>
    %447 = vector.broadcast %445 : f32 to vector<2x256xf32>
    %448 = arith.mulf %447, %402 : vector<2x256xf32>
    %449 = vector.broadcast %446 : f32 to vector<2x256xf32>
    %450 = arith.mulf %449, %404 : vector<2x256xf32>
    %451 = arith.addf %448, %450 : vector<2x256xf32>
    %452 = vector.broadcast %444 : vector<1x256xf32> to vector<2x256xf32>
    %453 = arith.mulf %452, %451 : vector<2x256xf32>
    %454 = arith.addf %443, %453 : vector<2x256xf32>
    %c4_137 = arith.constant 4 : index
    %c0_138 = arith.constant 0 : index
    %455 = vector.load %arg4[%c4_137, %c0_138] : memref<14x256xf32, #tpu.memory_space<vmem>>, vector<1x256xf32>
    %c240_i32_139 = arith.constant 240 : i32
    %456 = tpu.dynamic_rotate %402 by %c240_i32_139 dim 1 : vector<2x256xf32>, i32 -> vector<2x256xf32>
    %c240_i32_140 = arith.constant 240 : i32
    %457 = tpu.dynamic_rotate %404 by %c240_i32_140 dim 1 : vector<2x256xf32>, i32 -> vector<2x256xf32>
    %c32 = arith.constant 32 : index
    %458 = memref.load %arg2[%c32] : memref<98xf32, #tpu.memory_space<smem>>
    %c81 = arith.constant 81 : index
    %459 = memref.load %arg2[%c81] : memref<98xf32, #tpu.memory_space<smem>>
    %460 = vector.broadcast %458 : f32 to vector<2x256xf32>
    %461 = arith.mulf %460, %456 : vector<2x256xf32>
    %462 = vector.broadcast %459 : f32 to vector<2x256xf32>
    %463 = arith.mulf %462, %457 : vector<2x256xf32>
    %464 = arith.addf %461, %463 : vector<2x256xf32>
    %465 = vector.broadcast %455 : vector<1x256xf32> to vector<2x256xf32>
    %466 = arith.mulf %465, %464 : vector<2x256xf32>
    %467 = arith.addf %454, %466 : vector<2x256xf32>
    %c5_141 = arith.constant 5 : index
    %c0_142 = arith.constant 0 : index
    %468 = vector.load %arg4[%c5_141, %c0_142] : memref<14x256xf32, #tpu.memory_space<vmem>>, vector<1x256xf32>
    %c224_i32_143 = arith.constant 224 : i32
    %469 = tpu.dynamic_rotate %402 by %c224_i32_143 dim 1 : vector<2x256xf32>, i32 -> vector<2x256xf32>
    %c224_i32_144 = arith.constant 224 : i32
    %470 = tpu.dynamic_rotate %404 by %c224_i32_144 dim 1 : vector<2x256xf32>, i32 -> vector<2x256xf32>
    %c39 = arith.constant 39 : index
    %471 = memref.load %arg2[%c39] : memref<98xf32, #tpu.memory_space<smem>>
    %c88 = arith.constant 88 : index
    %472 = memref.load %arg2[%c88] : memref<98xf32, #tpu.memory_space<smem>>
    %473 = vector.broadcast %471 : f32 to vector<2x256xf32>
    %474 = arith.mulf %473, %469 : vector<2x256xf32>
    %475 = vector.broadcast %472 : f32 to vector<2x256xf32>
    %476 = arith.mulf %475, %470 : vector<2x256xf32>
    %477 = arith.addf %474, %476 : vector<2x256xf32>
    %478 = vector.broadcast %468 : vector<1x256xf32> to vector<2x256xf32>
    %479 = arith.mulf %478, %477 : vector<2x256xf32>
    %480 = arith.addf %467, %479 : vector<2x256xf32>
    %c6_145 = arith.constant 6 : index
    %c0_146 = arith.constant 0 : index
    %481 = vector.load %arg4[%c6_145, %c0_146] : memref<14x256xf32, #tpu.memory_space<vmem>>, vector<1x256xf32>
    %c208_i32_147 = arith.constant 208 : i32
    %482 = tpu.dynamic_rotate %402 by %c208_i32_147 dim 1 : vector<2x256xf32>, i32 -> vector<2x256xf32>
    %c208_i32_148 = arith.constant 208 : i32
    %483 = tpu.dynamic_rotate %404 by %c208_i32_148 dim 1 : vector<2x256xf32>, i32 -> vector<2x256xf32>
    %c46 = arith.constant 46 : index
    %484 = memref.load %arg2[%c46] : memref<98xf32, #tpu.memory_space<smem>>
    %c95 = arith.constant 95 : index
    %485 = memref.load %arg2[%c95] : memref<98xf32, #tpu.memory_space<smem>>
    %486 = vector.broadcast %484 : f32 to vector<2x256xf32>
    %487 = arith.mulf %486, %482 : vector<2x256xf32>
    %488 = vector.broadcast %485 : f32 to vector<2x256xf32>
    %489 = arith.mulf %488, %483 : vector<2x256xf32>
    %490 = arith.addf %487, %489 : vector<2x256xf32>
    %491 = vector.broadcast %481 : vector<1x256xf32> to vector<2x256xf32>
    %492 = arith.mulf %491, %490 : vector<2x256xf32>
    %493 = arith.addf %480, %492 : vector<2x256xf32>
    %c12 = arith.constant 12 : index
    %c0_149 = arith.constant 0 : index
    %494 = vector.load %arg4[%c12, %c0_149] : memref<14x256xf32, #tpu.memory_space<vmem>>, vector<1x256xf32>
    %c254_i32 = arith.constant 254 : i32
    %495 = tpu.dynamic_rotate %12 by %c254_i32 dim 1 : vector<2x256xf32>, i32 -> vector<2x256xf32>
    %c254_i32_150 = arith.constant 254 : i32
    %496 = tpu.dynamic_rotate %13 by %c254_i32_150 dim 1 : vector<2x256xf32>, i32 -> vector<2x256xf32>
    %497 = vector.broadcast %494 : vector<1x256xf32> to vector<2x256xf32>
    %498 = arith.mulf %495, %497 : vector<2x256xf32>
    %499 = vector.broadcast %494 : vector<1x256xf32> to vector<2x256xf32>
    %500 = arith.mulf %496, %499 : vector<2x256xf32>
    %c0_151 = arith.constant 0 : index
    %c0_152 = arith.constant 0 : index
    %501 = vector.load %arg4[%c0_151, %c0_152] : memref<14x256xf32, #tpu.memory_space<vmem>>, vector<1x256xf32>
    %c48_i32_153 = arith.constant 48 : i32
    %502 = tpu.dynamic_rotate %498 by %c48_i32_153 dim 1 : vector<2x256xf32>, i32 -> vector<2x256xf32>
    %c48_i32_154 = arith.constant 48 : i32
    %503 = tpu.dynamic_rotate %500 by %c48_i32_154 dim 1 : vector<2x256xf32>, i32 -> vector<2x256xf32>
    %c5_155 = arith.constant 5 : index
    %504 = memref.load %arg2[%c5_155] : memref<98xf32, #tpu.memory_space<smem>>
    %c54 = arith.constant 54 : index
    %505 = memref.load %arg2[%c54] : memref<98xf32, #tpu.memory_space<smem>>
    %506 = vector.broadcast %504 : f32 to vector<2x256xf32>
    %507 = arith.mulf %506, %502 : vector<2x256xf32>
    %508 = vector.broadcast %505 : f32 to vector<2x256xf32>
    %509 = arith.mulf %508, %503 : vector<2x256xf32>
    %510 = arith.addf %507, %509 : vector<2x256xf32>
    %511 = vector.broadcast %501 : vector<1x256xf32> to vector<2x256xf32>
    %512 = arith.mulf %511, %510 : vector<2x256xf32>
    %513 = arith.addf %493, %512 : vector<2x256xf32>
    %c1_156 = arith.constant 1 : index
    %c0_157 = arith.constant 0 : index
    %514 = vector.load %arg4[%c1_156, %c0_157] : memref<14x256xf32, #tpu.memory_space<vmem>>, vector<1x256xf32>
    %c32_i32_158 = arith.constant 32 : i32
    %515 = tpu.dynamic_rotate %498 by %c32_i32_158 dim 1 : vector<2x256xf32>, i32 -> vector<2x256xf32>
    %c32_i32_159 = arith.constant 32 : i32
    %516 = tpu.dynamic_rotate %500 by %c32_i32_159 dim 1 : vector<2x256xf32>, i32 -> vector<2x256xf32>
    %c12_160 = arith.constant 12 : index
    %517 = memref.load %arg2[%c12_160] : memref<98xf32, #tpu.memory_space<smem>>
    %c61 = arith.constant 61 : index
    %518 = memref.load %arg2[%c61] : memref<98xf32, #tpu.memory_space<smem>>
    %519 = vector.broadcast %517 : f32 to vector<2x256xf32>
    %520 = arith.mulf %519, %515 : vector<2x256xf32>
    %521 = vector.broadcast %518 : f32 to vector<2x256xf32>
    %522 = arith.mulf %521, %516 : vector<2x256xf32>
    %523 = arith.addf %520, %522 : vector<2x256xf32>
    %524 = vector.broadcast %514 : vector<1x256xf32> to vector<2x256xf32>
    %525 = arith.mulf %524, %523 : vector<2x256xf32>
    %526 = arith.addf %513, %525 : vector<2x256xf32>
    %c2_161 = arith.constant 2 : index
    %c0_162 = arith.constant 0 : index
    %527 = vector.load %arg4[%c2_161, %c0_162] : memref<14x256xf32, #tpu.memory_space<vmem>>, vector<1x256xf32>
    %c16_i32_163 = arith.constant 16 : i32
    %528 = tpu.dynamic_rotate %498 by %c16_i32_163 dim 1 : vector<2x256xf32>, i32 -> vector<2x256xf32>
    %c16_i32_164 = arith.constant 16 : i32
    %529 = tpu.dynamic_rotate %500 by %c16_i32_164 dim 1 : vector<2x256xf32>, i32 -> vector<2x256xf32>
    %c19 = arith.constant 19 : index
    %530 = memref.load %arg2[%c19] : memref<98xf32, #tpu.memory_space<smem>>
    %c68 = arith.constant 68 : index
    %531 = memref.load %arg2[%c68] : memref<98xf32, #tpu.memory_space<smem>>
    %532 = vector.broadcast %530 : f32 to vector<2x256xf32>
    %533 = arith.mulf %532, %528 : vector<2x256xf32>
    %534 = vector.broadcast %531 : f32 to vector<2x256xf32>
    %535 = arith.mulf %534, %529 : vector<2x256xf32>
    %536 = arith.addf %533, %535 : vector<2x256xf32>
    %537 = vector.broadcast %527 : vector<1x256xf32> to vector<2x256xf32>
    %538 = arith.mulf %537, %536 : vector<2x256xf32>
    %539 = arith.addf %526, %538 : vector<2x256xf32>
    %c3_165 = arith.constant 3 : index
    %c0_166 = arith.constant 0 : index
    %540 = vector.load %arg4[%c3_165, %c0_166] : memref<14x256xf32, #tpu.memory_space<vmem>>, vector<1x256xf32>
    %c26 = arith.constant 26 : index
    %541 = memref.load %arg2[%c26] : memref<98xf32, #tpu.memory_space<smem>>
    %c75 = arith.constant 75 : index
    %542 = memref.load %arg2[%c75] : memref<98xf32, #tpu.memory_space<smem>>
    %543 = vector.broadcast %541 : f32 to vector<2x256xf32>
    %544 = arith.mulf %543, %498 : vector<2x256xf32>
    %545 = vector.broadcast %542 : f32 to vector<2x256xf32>
    %546 = arith.mulf %545, %500 : vector<2x256xf32>
    %547 = arith.addf %544, %546 : vector<2x256xf32>
    %548 = vector.broadcast %540 : vector<1x256xf32> to vector<2x256xf32>
    %549 = arith.mulf %548, %547 : vector<2x256xf32>
    %550 = arith.addf %539, %549 : vector<2x256xf32>
    %c4_167 = arith.constant 4 : index
    %c0_168 = arith.constant 0 : index
    %551 = vector.load %arg4[%c4_167, %c0_168] : memref<14x256xf32, #tpu.memory_space<vmem>>, vector<1x256xf32>
    %c240_i32_169 = arith.constant 240 : i32
    %552 = tpu.dynamic_rotate %498 by %c240_i32_169 dim 1 : vector<2x256xf32>, i32 -> vector<2x256xf32>
    %c240_i32_170 = arith.constant 240 : i32
    %553 = tpu.dynamic_rotate %500 by %c240_i32_170 dim 1 : vector<2x256xf32>, i32 -> vector<2x256xf32>
    %c33 = arith.constant 33 : index
    %554 = memref.load %arg2[%c33] : memref<98xf32, #tpu.memory_space<smem>>
    %c82 = arith.constant 82 : index
    %555 = memref.load %arg2[%c82] : memref<98xf32, #tpu.memory_space<smem>>
    %556 = vector.broadcast %554 : f32 to vector<2x256xf32>
    %557 = arith.mulf %556, %552 : vector<2x256xf32>
    %558 = vector.broadcast %555 : f32 to vector<2x256xf32>
    %559 = arith.mulf %558, %553 : vector<2x256xf32>
    %560 = arith.addf %557, %559 : vector<2x256xf32>
    %561 = vector.broadcast %551 : vector<1x256xf32> to vector<2x256xf32>
    %562 = arith.mulf %561, %560 : vector<2x256xf32>
    %563 = arith.addf %550, %562 : vector<2x256xf32>
    %c5_171 = arith.constant 5 : index
    %c0_172 = arith.constant 0 : index
    %564 = vector.load %arg4[%c5_171, %c0_172] : memref<14x256xf32, #tpu.memory_space<vmem>>, vector<1x256xf32>
    %c224_i32_173 = arith.constant 224 : i32
    %565 = tpu.dynamic_rotate %498 by %c224_i32_173 dim 1 : vector<2x256xf32>, i32 -> vector<2x256xf32>
    %c224_i32_174 = arith.constant 224 : i32
    %566 = tpu.dynamic_rotate %500 by %c224_i32_174 dim 1 : vector<2x256xf32>, i32 -> vector<2x256xf32>
    %c40 = arith.constant 40 : index
    %567 = memref.load %arg2[%c40] : memref<98xf32, #tpu.memory_space<smem>>
    %c89 = arith.constant 89 : index
    %568 = memref.load %arg2[%c89] : memref<98xf32, #tpu.memory_space<smem>>
    %569 = vector.broadcast %567 : f32 to vector<2x256xf32>
    %570 = arith.mulf %569, %565 : vector<2x256xf32>
    %571 = vector.broadcast %568 : f32 to vector<2x256xf32>
    %572 = arith.mulf %571, %566 : vector<2x256xf32>
    %573 = arith.addf %570, %572 : vector<2x256xf32>
    %574 = vector.broadcast %564 : vector<1x256xf32> to vector<2x256xf32>
    %575 = arith.mulf %574, %573 : vector<2x256xf32>
    %576 = arith.addf %563, %575 : vector<2x256xf32>
    %c6_175 = arith.constant 6 : index
    %c0_176 = arith.constant 0 : index
    %577 = vector.load %arg4[%c6_175, %c0_176] : memref<14x256xf32, #tpu.memory_space<vmem>>, vector<1x256xf32>
    %c208_i32_177 = arith.constant 208 : i32
    %578 = tpu.dynamic_rotate %498 by %c208_i32_177 dim 1 : vector<2x256xf32>, i32 -> vector<2x256xf32>
    %c208_i32_178 = arith.constant 208 : i32
    %579 = tpu.dynamic_rotate %500 by %c208_i32_178 dim 1 : vector<2x256xf32>, i32 -> vector<2x256xf32>
    %c47 = arith.constant 47 : index
    %580 = memref.load %arg2[%c47] : memref<98xf32, #tpu.memory_space<smem>>
    %c96 = arith.constant 96 : index
    %581 = memref.load %arg2[%c96] : memref<98xf32, #tpu.memory_space<smem>>
    %582 = vector.broadcast %580 : f32 to vector<2x256xf32>
    %583 = arith.mulf %582, %578 : vector<2x256xf32>
    %584 = vector.broadcast %581 : f32 to vector<2x256xf32>
    %585 = arith.mulf %584, %579 : vector<2x256xf32>
    %586 = arith.addf %583, %585 : vector<2x256xf32>
    %587 = vector.broadcast %577 : vector<1x256xf32> to vector<2x256xf32>
    %588 = arith.mulf %587, %586 : vector<2x256xf32>
    %589 = arith.addf %576, %588 : vector<2x256xf32>
    %c13 = arith.constant 13 : index
    %c0_179 = arith.constant 0 : index
    %590 = vector.load %arg4[%c13, %c0_179] : memref<14x256xf32, #tpu.memory_space<vmem>>, vector<1x256xf32>
    %c253_i32 = arith.constant 253 : i32
    %591 = tpu.dynamic_rotate %12 by %c253_i32 dim 1 : vector<2x256xf32>, i32 -> vector<2x256xf32>
    %c253_i32_180 = arith.constant 253 : i32
    %592 = tpu.dynamic_rotate %13 by %c253_i32_180 dim 1 : vector<2x256xf32>, i32 -> vector<2x256xf32>
    %593 = vector.broadcast %590 : vector<1x256xf32> to vector<2x256xf32>
    %594 = arith.mulf %591, %593 : vector<2x256xf32>
    %595 = vector.broadcast %590 : vector<1x256xf32> to vector<2x256xf32>
    %596 = arith.mulf %592, %595 : vector<2x256xf32>
    %c0_181 = arith.constant 0 : index
    %c0_182 = arith.constant 0 : index
    %597 = vector.load %arg4[%c0_181, %c0_182] : memref<14x256xf32, #tpu.memory_space<vmem>>, vector<1x256xf32>
    %c48_i32_183 = arith.constant 48 : i32
    %598 = tpu.dynamic_rotate %594 by %c48_i32_183 dim 1 : vector<2x256xf32>, i32 -> vector<2x256xf32>
    %c48_i32_184 = arith.constant 48 : i32
    %599 = tpu.dynamic_rotate %596 by %c48_i32_184 dim 1 : vector<2x256xf32>, i32 -> vector<2x256xf32>
    %c6_185 = arith.constant 6 : index
    %600 = memref.load %arg2[%c6_185] : memref<98xf32, #tpu.memory_space<smem>>
    %c55 = arith.constant 55 : index
    %601 = memref.load %arg2[%c55] : memref<98xf32, #tpu.memory_space<smem>>
    %602 = vector.broadcast %600 : f32 to vector<2x256xf32>
    %603 = arith.mulf %602, %598 : vector<2x256xf32>
    %604 = vector.broadcast %601 : f32 to vector<2x256xf32>
    %605 = arith.mulf %604, %599 : vector<2x256xf32>
    %606 = arith.addf %603, %605 : vector<2x256xf32>
    %607 = vector.broadcast %597 : vector<1x256xf32> to vector<2x256xf32>
    %608 = arith.mulf %607, %606 : vector<2x256xf32>
    %609 = arith.addf %589, %608 : vector<2x256xf32>
    %c1_186 = arith.constant 1 : index
    %c0_187 = arith.constant 0 : index
    %610 = vector.load %arg4[%c1_186, %c0_187] : memref<14x256xf32, #tpu.memory_space<vmem>>, vector<1x256xf32>
    %c32_i32_188 = arith.constant 32 : i32
    %611 = tpu.dynamic_rotate %594 by %c32_i32_188 dim 1 : vector<2x256xf32>, i32 -> vector<2x256xf32>
    %c32_i32_189 = arith.constant 32 : i32
    %612 = tpu.dynamic_rotate %596 by %c32_i32_189 dim 1 : vector<2x256xf32>, i32 -> vector<2x256xf32>
    %c13_190 = arith.constant 13 : index
    %613 = memref.load %arg2[%c13_190] : memref<98xf32, #tpu.memory_space<smem>>
    %c62 = arith.constant 62 : index
    %614 = memref.load %arg2[%c62] : memref<98xf32, #tpu.memory_space<smem>>
    %615 = vector.broadcast %613 : f32 to vector<2x256xf32>
    %616 = arith.mulf %615, %611 : vector<2x256xf32>
    %617 = vector.broadcast %614 : f32 to vector<2x256xf32>
    %618 = arith.mulf %617, %612 : vector<2x256xf32>
    %619 = arith.addf %616, %618 : vector<2x256xf32>
    %620 = vector.broadcast %610 : vector<1x256xf32> to vector<2x256xf32>
    %621 = arith.mulf %620, %619 : vector<2x256xf32>
    %622 = arith.addf %609, %621 : vector<2x256xf32>
    %c2_191 = arith.constant 2 : index
    %c0_192 = arith.constant 0 : index
    %623 = vector.load %arg4[%c2_191, %c0_192] : memref<14x256xf32, #tpu.memory_space<vmem>>, vector<1x256xf32>
    %c16_i32_193 = arith.constant 16 : i32
    %624 = tpu.dynamic_rotate %594 by %c16_i32_193 dim 1 : vector<2x256xf32>, i32 -> vector<2x256xf32>
    %c16_i32_194 = arith.constant 16 : i32
    %625 = tpu.dynamic_rotate %596 by %c16_i32_194 dim 1 : vector<2x256xf32>, i32 -> vector<2x256xf32>
    %c20 = arith.constant 20 : index
    %626 = memref.load %arg2[%c20] : memref<98xf32, #tpu.memory_space<smem>>
    %c69 = arith.constant 69 : index
    %627 = memref.load %arg2[%c69] : memref<98xf32, #tpu.memory_space<smem>>
    %628 = vector.broadcast %626 : f32 to vector<2x256xf32>
    %629 = arith.mulf %628, %624 : vector<2x256xf32>
    %630 = vector.broadcast %627 : f32 to vector<2x256xf32>
    %631 = arith.mulf %630, %625 : vector<2x256xf32>
    %632 = arith.addf %629, %631 : vector<2x256xf32>
    %633 = vector.broadcast %623 : vector<1x256xf32> to vector<2x256xf32>
    %634 = arith.mulf %633, %632 : vector<2x256xf32>
    %635 = arith.addf %622, %634 : vector<2x256xf32>
    %c3_195 = arith.constant 3 : index
    %c0_196 = arith.constant 0 : index
    %636 = vector.load %arg4[%c3_195, %c0_196] : memref<14x256xf32, #tpu.memory_space<vmem>>, vector<1x256xf32>
    %c27 = arith.constant 27 : index
    %637 = memref.load %arg2[%c27] : memref<98xf32, #tpu.memory_space<smem>>
    %c76 = arith.constant 76 : index
    %638 = memref.load %arg2[%c76] : memref<98xf32, #tpu.memory_space<smem>>
    %639 = vector.broadcast %637 : f32 to vector<2x256xf32>
    %640 = arith.mulf %639, %594 : vector<2x256xf32>
    %641 = vector.broadcast %638 : f32 to vector<2x256xf32>
    %642 = arith.mulf %641, %596 : vector<2x256xf32>
    %643 = arith.addf %640, %642 : vector<2x256xf32>
    %644 = vector.broadcast %636 : vector<1x256xf32> to vector<2x256xf32>
    %645 = arith.mulf %644, %643 : vector<2x256xf32>
    %646 = arith.addf %635, %645 : vector<2x256xf32>
    %c4_197 = arith.constant 4 : index
    %c0_198 = arith.constant 0 : index
    %647 = vector.load %arg4[%c4_197, %c0_198] : memref<14x256xf32, #tpu.memory_space<vmem>>, vector<1x256xf32>
    %c240_i32_199 = arith.constant 240 : i32
    %648 = tpu.dynamic_rotate %594 by %c240_i32_199 dim 1 : vector<2x256xf32>, i32 -> vector<2x256xf32>
    %c240_i32_200 = arith.constant 240 : i32
    %649 = tpu.dynamic_rotate %596 by %c240_i32_200 dim 1 : vector<2x256xf32>, i32 -> vector<2x256xf32>
    %c34 = arith.constant 34 : index
    %650 = memref.load %arg2[%c34] : memref<98xf32, #tpu.memory_space<smem>>
    %c83 = arith.constant 83 : index
    %651 = memref.load %arg2[%c83] : memref<98xf32, #tpu.memory_space<smem>>
    %652 = vector.broadcast %650 : f32 to vector<2x256xf32>
    %653 = arith.mulf %652, %648 : vector<2x256xf32>
    %654 = vector.broadcast %651 : f32 to vector<2x256xf32>
    %655 = arith.mulf %654, %649 : vector<2x256xf32>
    %656 = arith.addf %653, %655 : vector<2x256xf32>
    %657 = vector.broadcast %647 : vector<1x256xf32> to vector<2x256xf32>
    %658 = arith.mulf %657, %656 : vector<2x256xf32>
    %659 = arith.addf %646, %658 : vector<2x256xf32>
    %c5_201 = arith.constant 5 : index
    %c0_202 = arith.constant 0 : index
    %660 = vector.load %arg4[%c5_201, %c0_202] : memref<14x256xf32, #tpu.memory_space<vmem>>, vector<1x256xf32>
    %c224_i32_203 = arith.constant 224 : i32
    %661 = tpu.dynamic_rotate %594 by %c224_i32_203 dim 1 : vector<2x256xf32>, i32 -> vector<2x256xf32>
    %c224_i32_204 = arith.constant 224 : i32
    %662 = tpu.dynamic_rotate %596 by %c224_i32_204 dim 1 : vector<2x256xf32>, i32 -> vector<2x256xf32>
    %c41 = arith.constant 41 : index
    %663 = memref.load %arg2[%c41] : memref<98xf32, #tpu.memory_space<smem>>
    %c90 = arith.constant 90 : index
    %664 = memref.load %arg2[%c90] : memref<98xf32, #tpu.memory_space<smem>>
    %665 = vector.broadcast %663 : f32 to vector<2x256xf32>
    %666 = arith.mulf %665, %661 : vector<2x256xf32>
    %667 = vector.broadcast %664 : f32 to vector<2x256xf32>
    %668 = arith.mulf %667, %662 : vector<2x256xf32>
    %669 = arith.addf %666, %668 : vector<2x256xf32>
    %670 = vector.broadcast %660 : vector<1x256xf32> to vector<2x256xf32>
    %671 = arith.mulf %670, %669 : vector<2x256xf32>
    %672 = arith.addf %659, %671 : vector<2x256xf32>
    %c6_205 = arith.constant 6 : index
    %c0_206 = arith.constant 0 : index
    %673 = vector.load %arg4[%c6_205, %c0_206] : memref<14x256xf32, #tpu.memory_space<vmem>>, vector<1x256xf32>
    %c208_i32_207 = arith.constant 208 : i32
    %674 = tpu.dynamic_rotate %594 by %c208_i32_207 dim 1 : vector<2x256xf32>, i32 -> vector<2x256xf32>
    %c208_i32_208 = arith.constant 208 : i32
    %675 = tpu.dynamic_rotate %596 by %c208_i32_208 dim 1 : vector<2x256xf32>, i32 -> vector<2x256xf32>
    %c48 = arith.constant 48 : index
    %676 = memref.load %arg2[%c48] : memref<98xf32, #tpu.memory_space<smem>>
    %c97 = arith.constant 97 : index
    %677 = memref.load %arg2[%c97] : memref<98xf32, #tpu.memory_space<smem>>
    %678 = vector.broadcast %676 : f32 to vector<2x256xf32>
    %679 = arith.mulf %678, %674 : vector<2x256xf32>
    %680 = vector.broadcast %677 : f32 to vector<2x256xf32>
    %681 = arith.mulf %680, %675 : vector<2x256xf32>
    %682 = arith.addf %679, %681 : vector<2x256xf32>
    %683 = vector.broadcast %673 : vector<1x256xf32> to vector<2x256xf32>
    %684 = arith.mulf %683, %682 : vector<2x256xf32>
    %685 = arith.addf %672, %684 : vector<2x256xf32>
    %686 = arith.negf %685 : vector<2x256xf32>
    %687 = math.exp %686 : vector<2x256xf32>
    %cst = arith.constant 1.000000e+00 : f32
    %688 = vector.broadcast %cst : f32 to vector<2x256xf32>
    %689 = arith.addf %688, %687 : vector<2x256xf32>
    %690 = arith.divf %688, %689 : vector<2x256xf32>
    %c0_209 = arith.constant 0 : index
    %c0_210 = arith.constant 0 : index
    %c0_211 = arith.constant 0 : index
    %691 = vector.load %arg5[%c0_209, %c0_210, %c0_211] : memref<2x1x256xf32, #tpu.memory_space<vmem>>, vector<2x1x256xf32>
    %692 = vector.shape_cast %691 : vector<2x1x256xf32> to vector<2x256xf32>
    %693 = vector.shape_cast %690 : vector<2x256xf32> to vector<2x1x256xf32>
    tpu.vector_store %arg5[%c0_209, %c0_210, %c0_211], %693 {strides = array<i32>} : memref<2x1x256xf32, #tpu.memory_space<vmem>>, vector<2x1x256xf32>,
    return
  }
  func.func @transform_0(%arg0: i32) -> (i32, i32, i32) {
    %c0_i32 = arith.constant 0 : i32
    %c0_i32_0 = arith.constant 0 : i32
    %c0_i32_1 = arith.constant 0 : i32
    return %arg0, %c0_i32, %c0_i32_0 : i32, i32, i32
  }
  func.func @transform_1(%arg0: i32) -> i32 {
    %c0_i32 = arith.constant 0 : i32
    %c0_i32_0 = arith.constant 0 : i32
    return %c0_i32 : i32
  }
  func.func @transform_2(%arg0: i32) -> i32 {
    %c0_i32 = arith.constant 0 : i32
    %c0_i32_0 = arith.constant 0 : i32
    return %c0_i32 : i32
  }
  func.func @transform_3(%arg0: i32) -> (i32, i32) {
    %c0_i32 = arith.constant 0 : i32
    %c0_i32_0 = arith.constant 0 : i32
    %c0_i32_1 = arith.constant 0 : i32
    return %c0_i32, %c0_i32_0 : i32, i32
  }
  func.func @transform_4(%arg0: i32) -> (i32, i32, i32) {
    %c0_i32 = arith.constant 0 : i32
    %c0_i32_0 = arith.constant 0 : i32
    %c0_i32_1 = arith.constant 0 : i32
    return %arg0, %c0_i32, %c0_i32_0 : i32, i32, i32
  }
}

</mosaic_0001>

<llo_original>
// kernel: spatial_attention_pallas.1
$region0: #{spatial_attention_pallas.1}
  #allocation0 [shape = 'u32[]', space=smem, size = 0x4, offset = 0x4, fixed_abs, tag = 'smem constant byte address 0x4 - core index']
  #allocation1 [shape = 'u32[144,128]{1,0:T(1,128)}', space=vmem, size = 0x12000, scoped, tag = 'internal scratch']
  #allocation2 [shape = 'f32[1]{0:T(128)S(6)}', space=smem, size = 0x200, scoped, tag = 'scoped memory for spatial_attention_pallas.1']
  %s0 = inlined_call_operand.vmem [shape: f32[2,4,256], index: 0, kind: input, shape index: {}]
  %s1 = inlined_call_operand.vmem [shape: f32[98], index: 1, kind: input, shape index: {}]
  %s2 = inlined_call_operand.<no memory space> [shape: f32[1], index: 2, kind: input, shape index: {}]
  %s3 = inlined_call_operand.vmem [shape: f32[14,256], index: 3, kind: input, shape index: {}]
  %s4 = inlined_call_operand.vmem [shape: f32[2,1,256], index: 4, kind: output, shape index: {}]
  %s5 = sld [smem:[#allocation0]]
  $region30: #{spatial_attention_pallas.1} parent=0
    _
  %s7 = ssub.s32 1, %s5
  %s8 = scalar_select 0, %s7, %s5
  %9 = sst [smem:[#allocation2]] %s2
  $region1: #{spatial_attention_pallas.1} parent=0
    #allocation3 [shape = 'u8[512]{0}', space=smem, size = 0x200, scoped, tag = 'input window, operand 1, single buffered']
    #allocation4 [shape = 's32[1]{0}', space=sflag, size = 0x4, scoped, tag = 'scoped memory for spatial_attention_pallas.1']
    %10 = vsyncpa [#allocation4], 0
    // Predicated region
    $region2: #{spatial_attention_pallas.1} parent=1 // pred_check
      _
    $region3: #{spatial_attention_pallas.1} parent=1 // pred_check_branch
      %12 = sbr.rel (0) target = $region5
    $region4: #{spatial_attention_pallas.1} parent=1 // pred_region
      _
    $region5: #{spatial_attention_pallas.1} parent=1 // pred_fallthru
      _
    // Predicated region
    $region6: #{spatial_attention_pallas.1} parent=1 // pred_check
      _
    $region7: #{spatial_attention_pallas.1} parent=1 // pred_check_branch
      %14 = sbr.rel (0) target = $region9
    $region8: #{spatial_attention_pallas.1} parent=1 // pred_region
      %s16 = ssub.s32 16, 16
      %17 = vsyncadd [#allocation4], %s16
      %s19 = sshll.u32 %s1, 4
      %s20 = int_to_ptr.vmem [resolvable:$true] %s19
      %22 = dma.vmem_to_smem %s20, 16, [#allocation3], [#allocation4]
    $region9: #{spatial_attention_pallas.1} parent=1 // pred_fallthru
      _
    // Predicated region
    $region10: #{spatial_attention_pallas.1} parent=1 // pred_check
      _
    $region11: #{spatial_attention_pallas.1} parent=1 // pred_check_branch
      %24 = sbr.rel (0) target = $region13
    $region12: #{spatial_attention_pallas.1} parent=1 // pred_region
      _
    $region13: #{spatial_attention_pallas.1} parent=1 // pred_fallthru
      _
    // Predicated region
    $region14: #{spatial_attention_pallas.1} parent=1 // pred_check
      _
    $region15: #{spatial_attention_pallas.1} parent=1 // pred_check_branch
      %26 = sbr.rel (0) target = $region17
    $region16: #{spatial_attention_pallas.1} parent=1 // pred_region
      _
    $region17: #{spatial_attention_pallas.1} parent=1 // pred_fallthru
      _
    // Predicated region
    $region18: #{spatial_attention_pallas.1} parent=1 // pred_check
      _
    $region19: #{spatial_attention_pallas.1} parent=1 // pred_check_branch
      %28 = sbr.rel (0) target = $region21
    $region20: #{spatial_attention_pallas.1} parent=1 // pred_region
      %29 = dma.done [#allocation4], 16
    $region21: #{spatial_attention_pallas.1} parent=1 // pred_fallthru
      _
    %30 = sfence
    %v31 = vld [vmem:[%s0] ss:$4 sm:$0x3]
    %s32 = scalar_lea.vmem %s0, 8
    %v33 = vld [vmem:[%s32] ss:$4 sm:$0x3]
    %s34 = scalar_lea.vmem %s0, 1
    %v35 = vld [vmem:[%s34] ss:$4 sm:$0x3]
    %s36 = scalar_lea.vmem %s0, 9
    %v37 = vld [vmem:[%s36] ss:$4 sm:$0x3]
    %v38 = vadd.f32 %v31, %v35
    %v39 = vadd.f32 %v33, %v37
    %v40 = vmax.f32 %v31, %v35
    %v41 = vmax.f32 %v33, %v37
    %s42 = scalar_lea.vmem %s0, 2
    %v43 = vld [vmem:[%s42] ss:$4 sm:$0x3]
    %s44 = scalar_lea.vmem %s0, 10
    %v45 = vld [vmem:[%s44] ss:$4 sm:$0x3]
    %v46 = vadd.f32 %v38, %v43
    %v47 = vadd.f32 %v39, %v45
    %v48 = vmax.f32 %v40, %v43
    %v49 = vmax.f32 %v41, %v45
    %s50 = scalar_lea.vmem %s0, 3
    %v51 = vld [vmem:[%s50] ss:$4 sm:$0x3]
    %s52 = scalar_lea.vmem %s0, 11
    %v53 = vld [vmem:[%s52] ss:$4 sm:$0x3]
    %v54 = vadd.f32 %v46, %v51
    %v55 = vadd.f32 %v47, %v53
    %v56 = vmax.f32 %v48, %v51
    %v57 = vmax.f32 %v49, %v53
    %s58 = sld [smem:[#allocation2]]
    %v59 = vstv %s58
    %s60 = scalar_lea.vmem %s3, 7
    %v61 = vld [vmem:[%s60] ss:$8 sm:$0x3]
    %v64 = vcombine.low %v54, %v55
    %v66 = vunpack.c.l.s4 1966171168
    %v67 = vunpack.c.0.s8 %v66
    %v68 = vlaneseq
    %v69 = vshrl.u32 %v68, 7
    %v70 = vsub.s32 %v67, %v69
    %v71 = vrot.slane %v64, %v70
    %v72 = vcombine.high %v71, %v71
    %v74 = vunpack.c.l.s4 1966171168
    %v75 = vunpack.c.0.s8 %v74
    %v76 = vlaneseq
    %v77 = vshrl.u32 %v76, 7
    %v78 = vsub.s32 %v75, %v77
    %v79 = vrot.slane %v71, %v78
    %v81 = vunpack.c.l.s4 1966171168
    %v82 = vunpack.c.0.s8 %v81
    %v83 = vlaneseq
    %v84 = vshrl.u32 %v83, 7
    %v85 = vsub.s32 %v82, %v84
    %v86 = vrot.slane %v72, %v85
    %89 = vrot.lane.b32.xlu0 %v79, 3
    %v90 = vpop.permute.xlu0 %89
    %91 = vrot.lane.b32.xlu0 %v86, 3
    %v92 = vpop.permute.xlu0 %91
    %v93 = vlaneseq
    %v94 = vand.u32 %v93, 127
    %vm95 = vcmp.lt.s32.totalorder %v94, 3
    %v96 = vsel %vm95, %v90, %v92
    %v97 = vsel %vm95, %v92, %v90
    %v100 = vcombine.low %v56, %v57
    %v102 = vunpack.c.l.s4 1966171168
    %v103 = vunpack.c.0.s8 %v102
    %v104 = vlaneseq
    %v105 = vshrl.u32 %v104, 7
    %v106 = vsub.s32 %v103, %v105
    %v107 = vrot.slane %v100, %v106
    %v108 = vcombine.high %v107, %v107
    %v110 = vunpack.c.l.s4 1966171168
    %v111 = vunpack.c.0.s8 %v110
    %v112 = vlaneseq
    %v113 = vshrl.u32 %v112, 7
    %v114 = vsub.s32 %v111, %v113
    %v115 = vrot.slane %v107, %v114
    %v117 = vunpack.c.l.s4 1966171168
    %v118 = vunpack.c.0.s8 %v117
    %v119 = vlaneseq
    %v120 = vshrl.u32 %v119, 7
    %v121 = vsub.s32 %v118, %v120
    %v122 = vrot.slane %v108, %v121
    %125 = vrot.lane.b32.xlu0 %v115, 3
    %v126 = vpop.permute.xlu0 %125
    %127 = vrot.lane.b32.xlu0 %v122, 3
    %v128 = vpop.permute.xlu0 %127
    %v129 = vsel %vm95, %v126, %v128
    %v130 = vsel %vm95, %v128, %v126
    %v132 = vlaneseq
    %v133 = vshrl.u32 %v132, 7
    %v134 = vsub.s32 0, %v133
    %v135 = vrot.slane %v61, %v134
    %v136 = vlaneseq
    %v137 = vshrl.u32 %v136, 7
    %v138 = vsub.s32 1, %v137
    %v139 = vrot.slane %v61, %v138
    %v142 = vmul.f32 %v97, %v135
    %v143 = vmul.f32 %v96, %v139
    %v144 = vmul.f32 %v130, %v135
    %v145 = vmul.f32 %v129, %v139
    %v146 = vld [vmem:[%s3] ss:$8 sm:$0x3]
    %147 = vrot.lane.b32.xlu0 %v142, 48
    %v148 = vpop.permute.xlu0 %147
    %149 = vrot.lane.b32.xlu0 %v143, 48
    %v150 = vpop.permute.xlu0 %149
    %vm151 = vcmp.lt.s32.totalorder %v94, 48
    %v152 = vsel %vm151, %v148, %v150
    %v153 = vsel %vm151, %v150, %v148
    %154 = vrot.lane.b32.xlu0 %v144, 48
    %v155 = vpop.permute.xlu0 %154
    %156 = vrot.lane.b32.xlu0 %v145, 48
    %v157 = vpop.permute.xlu0 %156
    %v158 = vsel %vm151, %v155, %v157
    %v159 = vsel %vm151, %v157, %v155
    %s160 = sld [smem:[#allocation3]]
    %s161 = sld [smem:[#allocation3 + $0x31]]
    %v162 = vstv %s160
    %v163 = vmul.f32 %v162, %v153
    %v164 = vmul.f32 %v162, %v152
    %v165 = vstv %s161
    %v166 = vmul.f32 %v165, %v159
    %v167 = vmul.f32 %v165, %v158
    %v168 = vadd.f32 %v163, %v166
    %v169 = vadd.f32 %v164, %v167
    %v171 = vlaneseq
    %v172 = vshrl.u32 %v171, 7
    %v173 = vsub.s32 0, %v172
    %v174 = vrot.slane %v146, %v173
    %v175 = vlaneseq
    %v176 = vshrl.u32 %v175, 7
    %v177 = vsub.s32 1, %v176
    %v178 = vrot.slane %v146, %v177
    %v181 = vmul.f32 %v174, %v168
    %v182 = vmul.f32 %v178, %v169
    %v183 = vadd.f32 %v59, %v181
    %v184 = vadd.f32 %v59, %v182
    %s185 = scalar_lea.vmem %s3, 1
    %v186 = vld [vmem:[%s185] ss:$8 sm:$0x3]
    %187 = vrot.lane.b32.xlu0 %v142, 32
    %v188 = vpop.permute.xlu0 %187
    %189 = vrot.lane.b32.xlu0 %v143, 32
    %v190 = vpop.permute.xlu0 %189
    %vm191 = vcmp.lt.s32.totalorder %v94, 32
    %v192 = vsel %vm191, %v188, %v190
    %v193 = vsel %vm191, %v190, %v188
    %194 = vrot.lane.b32.xlu0 %v144, 32
    %v195 = vpop.permute.xlu0 %194
    %196 = vrot.lane.b32.xlu0 %v145, 32
    %v197 = vpop.permute.xlu0 %196
    %v198 = vsel %vm191, %v195, %v197
    %v199 = vsel %vm191, %v197, %v195
    %s200 = sld [smem:[#allocation3 + $0x7]]
    %s201 = sld [smem:[#allocation3 + $0x38]]
    %v202 = vstv %s200
    %v203 = vmul.f32 %v202, %v193
    %v204 = vmul.f32 %v202, %v192
    %v205 = vstv %s201
    %v206 = vmul.f32 %v205, %v199
    %v207 = vmul.f32 %v205, %v198
    %v208 = vadd.f32 %v203, %v206
    %v209 = vadd.f32 %v204, %v207
    %v211 = vlaneseq
    %v212 = vshrl.u32 %v211, 7
    %v213 = vsub.s32 0, %v212
    %v214 = vrot.slane %v186, %v213
    %v215 = vlaneseq
    %v216 = vshrl.u32 %v215, 7
    %v217 = vsub.s32 1, %v216
    %v218 = vrot.slane %v186, %v217
    %v221 = vmul.f32 %v214, %v208
    %v222 = vmul.f32 %v218, %v209
    %v223 = vadd.f32 %v183, %v221
    %v224 = vadd.f32 %v184, %v222
    %s225 = scalar_lea.vmem %s3, 2
    %v226 = vld [vmem:[%s225] ss:$8 sm:$0x3]
    %227 = vrot.lane.b32.xlu0 %v142, 16
    %v228 = vpop.permute.xlu0 %227
    %229 = vrot.lane.b32.xlu0 %v143, 16
    %v230 = vpop.permute.xlu0 %229
    %vm231 = vcmp.lt.s32.totalorder %v94, 16
    %v232 = vsel %vm231, %v228, %v230
    %v233 = vsel %vm231, %v230, %v228
    %234 = vrot.lane.b32.xlu0 %v144, 16
    %v235 = vpop.permute.xlu0 %234
    %236 = vrot.lane.b32.xlu0 %v145, 16
    %v237 = vpop.permute.xlu0 %236
    %v238 = vsel %vm231, %v235, %v237
    %v239 = vsel %vm231, %v237, %v235
    %s240 = sld [smem:[#allocation3 + $0xe]]
    %s241 = sld [smem:[#allocation3 + $0x3f]]
    %v242 = vstv %s240
    %v243 = vmul.f32 %v242, %v233
    %v244 = vmul.f32 %v242, %v232
    %v245 = vstv %s241
    %v246 = vmul.f32 %v245, %v239
    %v247 = vmul.f32 %v245, %v238
    %v248 = vadd.f32 %v243, %v246
    %v249 = vadd.f32 %v244, %v247
    %v251 = vlaneseq
    %v252 = vshrl.u32 %v251, 7
    %v253 = vsub.s32 0, %v252
    %v254 = vrot.slane %v226, %v253
    %v255 = vlaneseq
    %v256 = vshrl.u32 %v255, 7
    %v257 = vsub.s32 1, %v256
    %v258 = vrot.slane %v226, %v257
    %v261 = vmul.f32 %v254, %v248
    %v262 = vmul.f32 %v258, %v249
    %v263 = vadd.f32 %v223, %v261
    %v264 = vadd.f32 %v224, %v262
    %s265 = scalar_lea.vmem %s3, 3
    %v266 = vld [vmem:[%s265] ss:$8 sm:$0x3]
    %s267 = sld [smem:[#allocation3 + $0x15]]
    %s268 = sld [smem:[#allocation3 + $0x46]]
    %v269 = vstv %s267
    %v270 = vmul.f32 %v269, %v142
    %v271 = vmul.f32 %v269, %v143
    %v272 = vstv %s268
    %v273 = vmul.f32 %v272, %v144
    %v274 = vmul.f32 %v272, %v145
    %v275 = vadd.f32 %v270, %v273
    %v276 = vadd.f32 %v271, %v274
    %v278 = vlaneseq
    %v279 = vshrl.u32 %v278, 7
    %v280 = vsub.s32 0, %v279
    %v281 = vrot.slane %v266, %v280
    %v282 = vlaneseq
    %v283 = vshrl.u32 %v282, 7
    %v284 = vsub.s32 1, %v283
    %v285 = vrot.slane %v266, %v284
    %v288 = vmul.f32 %v281, %v275
    %v289 = vmul.f32 %v285, %v276
    %v290 = vadd.f32 %v263, %v288
    %v291 = vadd.f32 %v264, %v289
    %s292 = scalar_lea.vmem %s3, 4
    %v293 = vld [vmem:[%s292] ss:$8 sm:$0x3]
    %294 = vrot.lane.b32.xlu0 %v142, 112
    %v295 = vpop.permute.xlu0 %294
    %296 = vrot.lane.b32.xlu0 %v143, 112
    %v297 = vpop.permute.xlu0 %296
    %vm298 = vcmp.lt.s32.totalorder %v94, 112
    %v299 = vsel %vm298, %v295, %v297
    %v300 = vsel %vm298, %v297, %v295
    %301 = vrot.lane.b32.xlu0 %v144, 112
    %v302 = vpop.permute.xlu0 %301
    %303 = vrot.lane.b32.xlu0 %v145, 112
    %v304 = vpop.permute.xlu0 %303
    %v305 = vsel %vm298, %v302, %v304
    %v306 = vsel %vm298, %v304, %v302
    %s307 = sld [smem:[#allocation3 + $0x1c]]
    %s308 = sld [smem:[#allocation3 + $0x4d]]
    %v309 = vstv %s307
    %v310 = vmul.f32 %v309, %v299
    %v311 = vmul.f32 %v309, %v300
    %v312 = vstv %s308
    %v313 = vmul.f32 %v312, %v305
    %v314 = vmul.f32 %v312, %v306
    %v315 = vadd.f32 %v310, %v313
    %v316 = vadd.f32 %v311, %v314
    %v318 = vlaneseq
    %v319 = vshrl.u32 %v318, 7
    %v320 = vsub.s32 0, %v319
    %v321 = vrot.slane %v293, %v320
    %v322 = vlaneseq
    %v323 = vshrl.u32 %v322, 7
    %v324 = vsub.s32 1, %v323
    %v325 = vrot.slane %v293, %v324
    %v328 = vmul.f32 %v321, %v315
    %v329 = vmul.f32 %v325, %v316
    %v330 = vadd.f32 %v290, %v328
    %v331 = vadd.f32 %v291, %v329
    %s332 = scalar_lea.vmem %s3, 5
    %v333 = vld [vmem:[%s332] ss:$8 sm:$0x3]
    %334 = vrot.lane.b32.xlu0 %v142, 96
    %v335 = vpop.permute.xlu0 %334
    %336 = vrot.lane.b32.xlu0 %v143, 96
    %v337 = vpop.permute.xlu0 %336
    %vm338 = vcmp.lt.s32.totalorder %v94, 96
    %v339 = vsel %vm338, %v335, %v337
    %v340 = vsel %vm338, %v337, %v335
    %341 = vrot.lane.b32.xlu0 %v144, 96
    %v342 = vpop.permute.xlu0 %341
    %343 = vrot.lane.b32.xlu0 %v145, 96
    %v344 = vpop.permute.xlu0 %343
    %v345 = vsel %vm338, %v342, %v344
    %v346 = vsel %vm338, %v344, %v342
    %s347 = sld [smem:[#allocation3 + $0x23]]
    %s348 = sld [smem:[#allocation3 + $0x54]]
    %v349 = vstv %s347
    %v350 = vmul.f32 %v349, %v339
    %v351 = vmul.f32 %v349, %v340
    %v352 = vstv %s348
    %v353 = vmul.f32 %v352, %v345
    %v354 = vmul.f32 %v352, %v346
    %v355 = vadd.f32 %v350, %v353
    %v356 = vadd.f32 %v351, %v354
    %v358 = vlaneseq
    %v359 = vshrl.u32 %v358, 7
    %v360 = vsub.s32 0, %v359
    %v361 = vrot.slane %v333, %v360
    %v362 = vlaneseq
    %v363 = vshrl.u32 %v362, 7
    %v364 = vsub.s32 1, %v363
    %v365 = vrot.slane %v333, %v364
    %v368 = vmul.f32 %v361, %v355
    %v369 = vmul.f32 %v365, %v356
    %v370 = vadd.f32 %v330, %v368
    %v371 = vadd.f32 %v331, %v369
    %s372 = scalar_lea.vmem %s3, 6
    %v373 = vld [vmem:[%s372] ss:$8 sm:$0x3]
    %374 = vrot.lane.b32.xlu0 %v142, 80
    %v375 = vpop.permute.xlu0 %374
    %376 = vrot.lane.b32.xlu0 %v143, 80
    %v377 = vpop.permute.xlu0 %376
    %vm378 = vcmp.lt.s32.totalorder %v94, 80
    %v379 = vsel %vm378, %v375, %v377
    %v380 = vsel %vm378, %v377, %v375
    %381 = vrot.lane.b32.xlu0 %v144, 80
    %v382 = vpop.permute.xlu0 %381
    %383 = vrot.lane.b32.xlu0 %v145, 80
    %v384 = vpop.permute.xlu0 %383
    %v385 = vsel %vm378, %v382, %v384
    %v386 = vsel %vm378, %v384, %v382
    %s387 = sld [smem:[#allocation3 + $0x2a]]
    %s388 = sld [smem:[#allocation3 + $0x5b]]
    %v389 = vstv %s387
    %v390 = vmul.f32 %v389, %v379
    %v391 = vmul.f32 %v389, %v380
    %v392 = vstv %s388
    %v393 = vmul.f32 %v392, %v385
    %v394 = vmul.f32 %v392, %v386
    %v395 = vadd.f32 %v390, %v393
    %v396 = vadd.f32 %v391, %v394
    %v398 = vlaneseq
    %v399 = vshrl.u32 %v398, 7
    %v400 = vsub.s32 0, %v399
    %v401 = vrot.slane %v373, %v400
    %v402 = vlaneseq
    %v403 = vshrl.u32 %v402, 7
    %v404 = vsub.s32 1, %v403
    %v405 = vrot.slane %v373, %v404
    %v408 = vmul.f32 %v401, %v395
    %v409 = vmul.f32 %v405, %v396
    %v410 = vadd.f32 %v370, %v408
    %v411 = vadd.f32 %v371, %v409
    %s412 = scalar_lea.vmem %s3, 16
    %v413 = vld [vmem:[%s412] ss:$8 sm:$0x3]
    %414 = vrot.lane.b32.xlu0 %v79, 2
    %v415 = vpop.permute.xlu0 %414
    %416 = vrot.lane.b32.xlu0 %v86, 2
    %v417 = vpop.permute.xlu0 %416
    %vm418 = vcmp.lt.s32.totalorder %v94, 2
    %v419 = vsel %vm418, %v415, %v417
    %v420 = vsel %vm418, %v417, %v415
    %421 = vrot.lane.b32.xlu0 %v115, 2
    %v422 = vpop.permute.xlu0 %421
    %423 = vrot.lane.b32.xlu0 %v122, 2
    %v424 = vpop.permute.xlu0 %423
    %v425 = vsel %vm418, %v422, %v424
    %v426 = vsel %vm418, %v424, %v422
    %v428 = vlaneseq
    %v429 = vshrl.u32 %v428, 7
    %v430 = vsub.s32 0, %v429
    %v431 = vrot.slane %v413, %v430
    %v432 = vlaneseq
    %v433 = vshrl.u32 %v432, 7
    %v434 = vsub.s32 1, %v433
    %v435 = vrot.slane %v413, %v434
    %v438 = vmul.f32 %v420, %v431
    %v439 = vmul.f32 %v419, %v435
    %v440 = vmul.f32 %v426, %v431
    %v441 = vmul.f32 %v425, %v435
    %442 = vrot.lane.b32.xlu0 %v438, 48
    %v443 = vpop.permute.xlu0 %442
    %444 = vrot.lane.b32.xlu0 %v439, 48
    %v445 = vpop.permute.xlu0 %444
    %v446 = vsel %vm151, %v443, %v445
    %v447 = vsel %vm151, %v445, %v443
    %448 = vrot.lane.b32.xlu0 %v440, 48
    %v449 = vpop.permute.xlu0 %448
    %450 = vrot.lane.b32.xlu0 %v441, 48
    %v451 = vpop.permute.xlu0 %450
    %v452 = vsel %vm151, %v449, %v451
    %v453 = vsel %vm151, %v451, %v449
    %s454 = sld [smem:[#allocation3 + $0x1]]
    %s455 = sld [smem:[#allocation3 + $0x32]]
    %v456 = vstv %s454
    %v457 = vmul.f32 %v456, %v447
    %v458 = vmul.f32 %v456, %v446
    %v459 = vstv %s455
    %v460 = vmul.f32 %v459, %v453
    %v461 = vmul.f32 %v459, %v452
    %v462 = vadd.f32 %v457, %v460
    %v463 = vadd.f32 %v458, %v461
    %v464 = vmul.f32 %v174, %v462
    %v465 = vmul.f32 %v178, %v463
    %v466 = vadd.f32 %v410, %v464
    %v467 = vadd.f32 %v411, %v465
    %468 = vrot.lane.b32.xlu0 %v438, 32
    %v469 = vpop.permute.xlu0 %468
    %470 = vrot.lane.b32.xlu0 %v439, 32
    %v471 = vpop.permute.xlu0 %470
    %v472 = vsel %vm191, %v469, %v471
    %v473 = vsel %vm191, %v471, %v469
    %474 = vrot.lane.b32.xlu0 %v440, 32
    %v475 = vpop.permute.xlu0 %474
    %476 = vrot.lane.b32.xlu0 %v441, 32
    %v477 = vpop.permute.xlu0 %476
    %v478 = vsel %vm191, %v475, %v477
    %v479 = vsel %vm191, %v477, %v475
    %s480 = sld [smem:[#allocation3 + $0x8]]
    %s481 = sld [smem:[#allocation3 + $0x39]]
    %v482 = vstv %s480
    %v483 = vmul.f32 %v482, %v473
    %v484 = vmul.f32 %v482, %v472
    %v485 = vstv %s481
    %v486 = vmul.f32 %v485, %v479
    %v487 = vmul.f32 %v485, %v478
    %v488 = vadd.f32 %v483, %v486
    %v489 = vadd.f32 %v484, %v487
    %v490 = vmul.f32 %v214, %v488
    %v491 = vmul.f32 %v218, %v489
    %v492 = vadd.f32 %v466, %v490
    %v493 = vadd.f32 %v467, %v491
    %494 = vrot.lane.b32.xlu0 %v438, 16
    %v495 = vpop.permute.xlu0 %494
    %496 = vrot.lane.b32.xlu0 %v439, 16
    %v497 = vpop.permute.xlu0 %496
    %v498 = vsel %vm231, %v495, %v497
    %v499 = vsel %vm231, %v497, %v495
    %500 = vrot.lane.b32.xlu0 %v440, 16
    %v501 = vpop.permute.xlu0 %500
    %502 = vrot.lane.b32.xlu0 %v441, 16
    %v503 = vpop.permute.xlu0 %502
    %v504 = vsel %vm231, %v501, %v503
    %v505 = vsel %vm231, %v503, %v501
    %s506 = sld [smem:[#allocation3 + $0xf]]
    %s507 = sld [smem:[#allocation3 + $0x40]]
    %v508 = vstv %s506
    %v509 = vmul.f32 %v508, %v499
    %v510 = vmul.f32 %v508, %v498
    %v511 = vstv %s507
    %v512 = vmul.f32 %v511, %v505
    %v513 = vmul.f32 %v511, %v504
    %v514 = vadd.f32 %v509, %v512
    %v515 = vadd.f32 %v510, %v513
    %v516 = vmul.f32 %v254, %v514
    %v517 = vmul.f32 %v258, %v515
    %v518 = vadd.f32 %v492, %v516
    %v519 = vadd.f32 %v493, %v517
    %s520 = sld [smem:[#allocation3 + $0x16]]
    %s521 = sld [smem:[#allocation3 + $0x47]]
    %v522 = vstv %s520
    %v523 = vmul.f32 %v522, %v438
    %v524 = vmul.f32 %v522, %v439
    %v525 = vstv %s521
    %v526 = vmul.f32 %v525, %v440
    %v527 = vmul.f32 %v525, %v441
    %v528 = vadd.f32 %v523, %v526
    %v529 = vadd.f32 %v524, %v527
    %v530 = vmul.f32 %v281, %v528
    %v531 = vmul.f32 %v285, %v529
    %v532 = vadd.f32 %v518, %v530
    %v533 = vadd.f32 %v519, %v531
    %534 = vrot.lane.b32.xlu0 %v438, 112
    %v535 = vpop.permute.xlu0 %534
    %536 = vrot.lane.b32.xlu0 %v439, 112
    %v537 = vpop.permute.xlu0 %536
    %v538 = vsel %vm298, %v535, %v537
    %v539 = vsel %vm298, %v537, %v535
    %540 = vrot.lane.b32.xlu0 %v440, 112
    %v541 = vpop.permute.xlu0 %540
    %542 = vrot.lane.b32.xlu0 %v441, 112
    %v543 = vpop.permute.xlu0 %542
    %v544 = vsel %vm298, %v541, %v543
    %v545 = vsel %vm298, %v543, %v541
    %s546 = sld [smem:[#allocation3 + $0x1d]]
    %s547 = sld [smem:[#allocation3 + $0x4e]]
    %v548 = vstv %s546
    %v549 = vmul.f32 %v548, %v538
    %v550 = vmul.f32 %v548, %v539
    %v551 = vstv %s547
    %v552 = vmul.f32 %v551, %v544
    %v553 = vmul.f32 %v551, %v545
    %v554 = vadd.f32 %v549, %v552
    %v555 = vadd.f32 %v550, %v553
    %v556 = vmul.f32 %v321, %v554
    %v557 = vmul.f32 %v325, %v555
    %v558 = vadd.f32 %v532, %v556
    %v559 = vadd.f32 %v533, %v557
    %560 = vrot.lane.b32.xlu0 %v438, 96
    %v561 = vpop.permute.xlu0 %560
    %562 = vrot.lane.b32.xlu0 %v439, 96
    %v563 = vpop.permute.xlu0 %562
    %v564 = vsel %vm338, %v561, %v563
    %v565 = vsel %vm338, %v563, %v561
    %566 = vrot.lane.b32.xlu0 %v440, 96
    %v567 = vpop.permute.xlu0 %566
    %568 = vrot.lane.b32.xlu0 %v441, 96
    %v569 = vpop.permute.xlu0 %568
    %v570 = vsel %vm338, %v567, %v569
    %v571 = vsel %vm338, %v569, %v567
    %s572 = sld [smem:[#allocation3 + $0x24]]
    %s573 = sld [smem:[#allocation3 + $0x55]]
    %v574 = vstv %s572
    %v575 = vmul.f32 %v574, %v564
    %v576 = vmul.f32 %v574, %v565
    %v577 = vstv %s573
    %v578 = vmul.f32 %v577, %v570
    %v579 = vmul.f32 %v577, %v571
    %v580 = vadd.f32 %v575, %v578
    %v581 = vadd.f32 %v576, %v579
    %v582 = vmul.f32 %v361, %v580
    %v583 = vmul.f32 %v365, %v581
    %v584 = vadd.f32 %v558, %v582
    %v585 = vadd.f32 %v559, %v583
    %586 = vrot.lane.b32.xlu0 %v438, 80
    %v587 = vpop.permute.xlu0 %586
    %588 = vrot.lane.b32.xlu0 %v439, 80
    %v589 = vpop.permute.xlu0 %588
    %v590 = vsel %vm378, %v587, %v589
    %v591 = vsel %vm378, %v589, %v587
    %592 = vrot.lane.b32.xlu0 %v440, 80
    %v593 = vpop.permute.xlu0 %592
    %594 = vrot.lane.b32.xlu0 %v441, 80
    %v595 = vpop.permute.xlu0 %594
    %v596 = vsel %vm378, %v593, %v595
    %v597 = vsel %vm378, %v595, %v593
    %s598 = sld [smem:[#allocation3 + $0x2b]]
    %s599 = sld [smem:[#allocation3 + $0x5c]]
    %v600 = vstv %s598
    %v601 = vmul.f32 %v600, %v590
    %v602 = vmul.f32 %v600, %v591
    %v603 = vstv %s599
    %v604 = vmul.f32 %v603, %v596
    %v605 = vmul.f32 %v603, %v597
    %v606 = vadd.f32 %v601, %v604
    %v607 = vadd.f32 %v602, %v605
    %v608 = vmul.f32 %v401, %v606
    %v609 = vmul.f32 %v405, %v607
    %v610 = vadd.f32 %v584, %v608
    %v611 = vadd.f32 %v585, %v609
    %s612 = scalar_lea.vmem %s3, 17
    %v613 = vld [vmem:[%s612] ss:$8 sm:$0x3]
    %614 = vrot.lane.b32.xlu0 %v79, 1
    %v615 = vpop.permute.xlu0 %614
    %616 = vrot.lane.b32.xlu0 %v86, 1
    %v617 = vpop.permute.xlu0 %616
    %vm618 = vcmp.lt.s32.totalorder %v94, 1
    %v619 = vsel %vm618, %v615, %v617
    %v620 = vsel %vm618, %v617, %v615
    %621 = vrot.lane.b32.xlu0 %v115, 1
    %v622 = vpop.permute.xlu0 %621
    %623 = vrot.lane.b32.xlu0 %v122, 1
    %v624 = vpop.permute.xlu0 %623
    %v625 = vsel %vm618, %v622, %v624
    %v626 = vsel %vm618, %v624, %v622
    %v628 = vlaneseq
    %v629 = vshrl.u32 %v628, 7
    %v630 = vsub.s32 0, %v629
    %v631 = vrot.slane %v613, %v630
    %v632 = vlaneseq
    %v633 = vshrl.u32 %v632, 7
    %v634 = vsub.s32 1, %v633
    %v635 = vrot.slane %v613, %v634
    %v638 = vmul.f32 %v620, %v631
    %v639 = vmul.f32 %v619, %v635
    %v640 = vmul.f32 %v626, %v631
    %v641 = vmul.f32 %v625, %v635
    %642 = vrot.lane.b32.xlu0 %v638, 48
    %v643 = vpop.permute.xlu0 %642
    %644 = vrot.lane.b32.xlu0 %v639, 48
    %v645 = vpop.permute.xlu0 %644
    %v646 = vsel %vm151, %v643, %v645
    %v647 = vsel %vm151, %v645, %v643
    %648 = vrot.lane.b32.xlu0 %v640, 48
    %v649 = vpop.permute.xlu0 %648
    %650 = vrot.lane.b32.xlu0 %v641, 48
    %v651 = vpop.permute.xlu0 %650
    %v652 = vsel %vm151, %v649, %v651
    %v653 = vsel %vm151, %v651, %v649
    %s654 = sld [smem:[#allocation3 + $0x2]]
    %s655 = sld [smem:[#allocation3 + $0x33]]
    %v656 = vstv %s654
    %v657 = vmul.f32 %v656, %v647
    %v658 = vmul.f32 %v656, %v646
    %v659 = vstv %s655
    %v660 = vmul.f32 %v659, %v653
    %v661 = vmul.f32 %v659, %v652
    %v662 = vadd.f32 %v657, %v660
    %v663 = vadd.f32 %v658, %v661
    %v664 = vmul.f32 %v174, %v662
    %v665 = vmul.f32 %v178, %v663
    %v666 = vadd.f32 %v610, %v664
    %v667 = vadd.f32 %v611, %v665
    %668 = vrot.lane.b32.xlu0 %v638, 32
    %v669 = vpop.permute.xlu0 %668
    %670 = vrot.lane.b32.xlu0 %v639, 32
    %v671 = vpop.permute.xlu0 %670
    %v672 = vsel %vm191, %v669, %v671
    %v673 = vsel %vm191, %v671, %v669
    %674 = vrot.lane.b32.xlu0 %v640, 32
    %v675 = vpop.permute.xlu0 %674
    %676 = vrot.lane.b32.xlu0 %v641, 32
    %v677 = vpop.permute.xlu0 %676
    %v678 = vsel %vm191, %v675, %v677
    %v679 = vsel %vm191, %v677, %v675
    %s680 = sld [smem:[#allocation3 + $0x9]]
    %s681 = sld [smem:[#allocation3 + $0x3a]]
    %v682 = vstv %s680
    %v683 = vmul.f32 %v682, %v673
    %v684 = vmul.f32 %v682, %v672
    %v685 = vstv %s681
    %v686 = vmul.f32 %v685, %v679
    %v687 = vmul.f32 %v685, %v678
    %v688 = vadd.f32 %v683, %v686
    %v689 = vadd.f32 %v684, %v687
    %v690 = vmul.f32 %v214, %v688
    %v691 = vmul.f32 %v218, %v689
    %v692 = vadd.f32 %v666, %v690
    %v693 = vadd.f32 %v667, %v691
    %694 = vrot.lane.b32.xlu0 %v638, 16
    %v695 = vpop.permute.xlu0 %694
    %696 = vrot.lane.b32.xlu0 %v639, 16
    %v697 = vpop.permute.xlu0 %696
    %v698 = vsel %vm231, %v695, %v697
    %v699 = vsel %vm231, %v697, %v695
    %700 = vrot.lane.b32.xlu0 %v640, 16
    %v701 = vpop.permute.xlu0 %700
    %702 = vrot.lane.b32.xlu0 %v641, 16
    %v703 = vpop.permute.xlu0 %702
    %v704 = vsel %vm231, %v701, %v703
    %v705 = vsel %vm231, %v703, %v701
    %s706 = sld [smem:[#allocation3 + $0x10]]
    %s707 = sld [smem:[#allocation3 + $0x41]]
    %v708 = vstv %s706
    %v709 = vmul.f32 %v708, %v699
    %v710 = vmul.f32 %v708, %v698
    %v711 = vstv %s707
    %v712 = vmul.f32 %v711, %v705
    %v713 = vmul.f32 %v711, %v704
    %v714 = vadd.f32 %v709, %v712
    %v715 = vadd.f32 %v710, %v713
    %v716 = vmul.f32 %v254, %v714
    %v717 = vmul.f32 %v258, %v715
    %v718 = vadd.f32 %v692, %v716
    %v719 = vadd.f32 %v693, %v717
    %s720 = sld [smem:[#allocation3 + $0x17]]
    %s721 = sld [smem:[#allocation3 + $0x48]]
    %v722 = vstv %s720
    %v723 = vmul.f32 %v722, %v638
    %v724 = vmul.f32 %v722, %v639
    %v725 = vstv %s721
    %v726 = vmul.f32 %v725, %v640
    %v727 = vmul.f32 %v725, %v641
    %v728 = vadd.f32 %v723, %v726
    %v729 = vadd.f32 %v724, %v727
    %v730 = vmul.f32 %v281, %v728
    %v731 = vmul.f32 %v285, %v729
    %v732 = vadd.f32 %v718, %v730
    %v733 = vadd.f32 %v719, %v731
    %734 = vrot.lane.b32.xlu0 %v638, 112
    %v735 = vpop.permute.xlu0 %734
    %736 = vrot.lane.b32.xlu0 %v639, 112
    %v737 = vpop.permute.xlu0 %736
    %v738 = vsel %vm298, %v735, %v737
    %v739 = vsel %vm298, %v737, %v735
    %740 = vrot.lane.b32.xlu0 %v640, 112
    %v741 = vpop.permute.xlu0 %740
    %742 = vrot.lane.b32.xlu0 %v641, 112
    %v743 = vpop.permute.xlu0 %742
    %v744 = vsel %vm298, %v741, %v743
    %v745 = vsel %vm298, %v743, %v741
    %s746 = sld [smem:[#allocation3 + $0x1e]]
    %s747 = sld [smem:[#allocation3 + $0x4f]]
    %v748 = vstv %s746
    %v749 = vmul.f32 %v748, %v738
    %v750 = vmul.f32 %v748, %v739
    %v751 = vstv %s747
    %v752 = vmul.f32 %v751, %v744
    %v753 = vmul.f32 %v751, %v745
    %v754 = vadd.f32 %v749, %v752
    %v755 = vadd.f32 %v750, %v753
    %v756 = vmul.f32 %v321, %v754
    %v757 = vmul.f32 %v325, %v755
    %v758 = vadd.f32 %v732, %v756
    %v759 = vadd.f32 %v733, %v757
    %760 = vrot.lane.b32.xlu0 %v638, 96
    %v761 = vpop.permute.xlu0 %760
    %762 = vrot.lane.b32.xlu0 %v639, 96
    %v763 = vpop.permute.xlu0 %762
    %v764 = vsel %vm338, %v761, %v763
    %v765 = vsel %vm338, %v763, %v761
    %766 = vrot.lane.b32.xlu0 %v640, 96
    %v767 = vpop.permute.xlu0 %766
    %768 = vrot.lane.b32.xlu0 %v641, 96
    %v769 = vpop.permute.xlu0 %768
    %v770 = vsel %vm338, %v767, %v769
    %v771 = vsel %vm338, %v769, %v767
    %s772 = sld [smem:[#allocation3 + $0x25]]
    %s773 = sld [smem:[#allocation3 + $0x56]]
    %v774 = vstv %s772
    %v775 = vmul.f32 %v774, %v764
    %v776 = vmul.f32 %v774, %v765
    %v777 = vstv %s773
    %v778 = vmul.f32 %v777, %v770
    %v779 = vmul.f32 %v777, %v771
    %v780 = vadd.f32 %v775, %v778
    %v781 = vadd.f32 %v776, %v779
    %v782 = vmul.f32 %v361, %v780
    %v783 = vmul.f32 %v365, %v781
    %v784 = vadd.f32 %v758, %v782
    %v785 = vadd.f32 %v759, %v783
    %786 = vrot.lane.b32.xlu0 %v638, 80
    %v787 = vpop.permute.xlu0 %786
    %788 = vrot.lane.b32.xlu0 %v639, 80
    %v789 = vpop.permute.xlu0 %788
    %v790 = vsel %vm378, %v787, %v789
    %v791 = vsel %vm378, %v789, %v787
    %792 = vrot.lane.b32.xlu0 %v640, 80
    %v793 = vpop.permute.xlu0 %792
    %794 = vrot.lane.b32.xlu0 %v641, 80
    %v795 = vpop.permute.xlu0 %794
    %v796 = vsel %vm378, %v793, %v795
    %v797 = vsel %vm378, %v795, %v793
    %s798 = sld [smem:[#allocation3 + $0x2c]]
    %s799 = sld [smem:[#allocation3 + $0x5d]]
    %v800 = vstv %s798
    %v801 = vmul.f32 %v800, %v790
    %v802 = vmul.f32 %v800, %v791
    %v803 = vstv %s799
    %v804 = vmul.f32 %v803, %v796
    %v805 = vmul.f32 %v803, %v797
    %v806 = vadd.f32 %v801, %v804
    %v807 = vadd.f32 %v802, %v805
    %v808 = vmul.f32 %v401, %v806
    %v809 = vmul.f32 %v405, %v807
    %v810 = vadd.f32 %v784, %v808
    %v811 = vadd.f32 %v785, %v809
    %s812 = scalar_lea.vmem %s3, 18
    %v813 = vld [vmem:[%s812] ss:$8 sm:$0x3]
    %v815 = vlaneseq
    %v816 = vshrl.u32 %v815, 7
    %v817 = vsub.s32 0, %v816
    %v818 = vrot.slane %v813, %v817
    %v819 = vlaneseq
    %v820 = vshrl.u32 %v819, 7
    %v821 = vsub.s32 1, %v820
    %v822 = vrot.slane %v813, %v821
    %v823 = vcombine.low %v818, %v822
    %v825 = vunpack.c.l.s4 1966171168
    %v826 = vunpack.c.0.s8 %v825
    %v827 = vlaneseq
    %v828 = vshrl.u32 %v827, 7
    %v829 = vsub.s32 %v826, %v828
    %v830 = vrot.slane %v823, %v829
    %v831 = vcombine.high %v830, %v830
    %v833 = vunpack.c.l.s4 1966171168
    %v834 = vunpack.c.0.s8 %v833
    %v835 = vlaneseq
    %v836 = vshrl.u32 %v835, 7
    %v837 = vsub.s32 %v834, %v836
    %v838 = vrot.slane %v830, %v837
    %v840 = vunpack.c.l.s4 1966171168
    %v841 = vunpack.c.0.s8 %v840
    %v842 = vlaneseq
    %v843 = vshrl.u32 %v842, 7
    %v844 = vsub.s32 %v841, %v843
    %v845 = vrot.slane %v831, %v844
    %v848 = vmul.f32 %v54, %v838
    %v849 = vmul.f32 %v55, %v845
    %v850 = vmul.f32 %v56, %v838
    %v851 = vmul.f32 %v57, %v845
    %v854 = vcombine.low %v848, %v849
    %v856 = vunpack.c.l.s4 1966171168
    %v857 = vunpack.c.0.s8 %v856
    %v858 = vlaneseq
    %v859 = vshrl.u32 %v858, 7
    %v860 = vsub.s32 %v857, %v859
    %v861 = vrot.slane %v854, %v860
    %v862 = vcombine.high %v861, %v861
    %v864 = vunpack.c.l.s4 1966171168
    %v865 = vunpack.c.0.s8 %v864
    %v866 = vlaneseq
    %v867 = vshrl.u32 %v866, 7
    %v868 = vsub.s32 %v865, %v867
    %v869 = vrot.slane %v861, %v868
    %v871 = vunpack.c.l.s4 1966171168
    %v872 = vunpack.c.0.s8 %v871
    %v873 = vlaneseq
    %v874 = vshrl.u32 %v873, 7
    %v875 = vsub.s32 %v872, %v874
    %v876 = vrot.slane %v862, %v875
    %879 = vrot.lane.b32.xlu0 %v869, 48
    %v880 = vpop.permute.xlu0 %879
    %881 = vrot.lane.b32.xlu0 %v876, 48
    %v882 = vpop.permute.xlu0 %881
    %v883 = vsel %vm151, %v880, %v882
    %v884 = vsel %vm151, %v882, %v880
    %v887 = vcombine.low %v850, %v851
    %v889 = vunpack.c.l.s4 1966171168
    %v890 = vunpack.c.0.s8 %v889
    %v891 = vlaneseq
    %v892 = vshrl.u32 %v891, 7
    %v893 = vsub.s32 %v890, %v892
    %v894 = vrot.slane %v887, %v893
    %v895 = vcombine.high %v894, %v894
    %v897 = vunpack.c.l.s4 1966171168
    %v898 = vunpack.c.0.s8 %v897
    %v899 = vlaneseq
    %v900 = vshrl.u32 %v899, 7
    %v901 = vsub.s32 %v898, %v900
    %v902 = vrot.slane %v894, %v901
    %v904 = vunpack.c.l.s4 1966171168
    %v905 = vunpack.c.0.s8 %v904
    %v906 = vlaneseq
    %v907 = vshrl.u32 %v906, 7
    %v908 = vsub.s32 %v905, %v907
    %v909 = vrot.slane %v895, %v908
    %912 = vrot.lane.b32.xlu0 %v902, 48
    %v913 = vpop.permute.xlu0 %912
    %914 = vrot.lane.b32.xlu0 %v909, 48
    %v915 = vpop.permute.xlu0 %914
    %v916 = vsel %vm151, %v913, %v915
    %v917 = vsel %vm151, %v915, %v913
    %s918 = sld [smem:[#allocation3 + $0x3]]
    %s919 = sld [smem:[#allocation3 + $0x34]]
    %v920 = vstv %s918
    %v921 = vmul.f32 %v920, %v884
    %v922 = vmul.f32 %v920, %v883
    %v923 = vstv %s919
    %v924 = vmul.f32 %v923, %v917
    %v925 = vmul.f32 %v923, %v916
    %v926 = vadd.f32 %v921, %v924
    %v927 = vadd.f32 %v922, %v925
    %v928 = vmul.f32 %v174, %v926
    %v929 = vmul.f32 %v178, %v927
    %v930 = vadd.f32 %v810, %v928
    %v931 = vadd.f32 %v811, %v929
    %932 = vrot.lane.b32.xlu0 %v869, 32
    %v933 = vpop.permute.xlu0 %932
    %934 = vrot.lane.b32.xlu0 %v876, 32
    %v935 = vpop.permute.xlu0 %934
    %v936 = vsel %vm191, %v933, %v935
    %v937 = vsel %vm191, %v935, %v933
    %938 = vrot.lane.b32.xlu0 %v902, 32
    %v939 = vpop.permute.xlu0 %938
    %940 = vrot.lane.b32.xlu0 %v909, 32
    %v941 = vpop.permute.xlu0 %940
    %v942 = vsel %vm191, %v939, %v941
    %v943 = vsel %vm191, %v941, %v939
    %s944 = sld [smem:[#allocation3 + $0xa]]
    %s945 = sld [smem:[#allocation3 + $0x3b]]
    %v946 = vstv %s944
    %v947 = vmul.f32 %v946, %v937
    %v948 = vmul.f32 %v946, %v936
    %v949 = vstv %s945
    %v950 = vmul.f32 %v949, %v943
    %v951 = vmul.f32 %v949, %v942
    %v952 = vadd.f32 %v947, %v950
    %v953 = vadd.f32 %v948, %v951
    %v954 = vmul.f32 %v214, %v952
    %v955 = vmul.f32 %v218, %v953
    %v956 = vadd.f32 %v930, %v954
    %v957 = vadd.f32 %v931, %v955
    %958 = vrot.lane.b32.xlu0 %v869, 16
    %v959 = vpop.permute.xlu0 %958
    %960 = vrot.lane.b32.xlu0 %v876, 16
    %v961 = vpop.permute.xlu0 %960
    %v962 = vsel %vm231, %v959, %v961
    %v963 = vsel %vm231, %v961, %v959
    %964 = vrot.lane.b32.xlu0 %v902, 16
    %v965 = vpop.permute.xlu0 %964
    %966 = vrot.lane.b32.xlu0 %v909, 16
    %v967 = vpop.permute.xlu0 %966
    %v968 = vsel %vm231, %v965, %v967
    %v969 = vsel %vm231, %v967, %v965
    %s970 = sld [smem:[#allocation3 + $0x11]]
    %s971 = sld [smem:[#allocation3 + $0x42]]
    %v972 = vstv %s970
    %v973 = vmul.f32 %v972, %v963
    %v974 = vmul.f32 %v972, %v962
    %v975 = vstv %s971
    %v976 = vmul.f32 %v975, %v969
    %v977 = vmul.f32 %v975, %v968
    %v978 = vadd.f32 %v973, %v976
    %v979 = vadd.f32 %v974, %v977
    %v980 = vmul.f32 %v254, %v978
    %v981 = vmul.f32 %v258, %v979
    %v982 = vadd.f32 %v956, %v980
    %v983 = vadd.f32 %v957, %v981
    %s984 = sld [smem:[#allocation3 + $0x18]]
    %s985 = sld [smem:[#allocation3 + $0x49]]
    %v986 = vstv %s984
    %v987 = vmul.f32 %v986, %v848
    %v988 = vmul.f32 %v986, %v849
    %v989 = vstv %s985
    %v990 = vmul.f32 %v989, %v850
    %v991 = vmul.f32 %v989, %v851
    %v992 = vadd.f32 %v987, %v990
    %v993 = vadd.f32 %v988, %v991
    %v996 = vcombine.low %v992, %v993
    %v998 = vunpack.c.l.s4 1966171168
    %v999 = vunpack.c.0.s8 %v998
    %v1000 = vlaneseq
    %v1001 = vshrl.u32 %v1000, 7
    %v1002 = vsub.s32 %v999, %v1001
    %v1003 = vrot.slane %v996, %v1002
    %v1004 = vcombine.high %v1003, %v1003
    %v1006 = vunpack.c.l.s4 1966171168
    %v1007 = vunpack.c.0.s8 %v1006
    %v1008 = vlaneseq
    %v1009 = vshrl.u32 %v1008, 7
    %v1010 = vsub.s32 %v1007, %v1009
    %v1011 = vrot.slane %v1003, %v1010
    %v1013 = vunpack.c.l.s4 1966171168
    %v1014 = vunpack.c.0.s8 %v1013
    %v1015 = vlaneseq
    %v1016 = vshrl.u32 %v1015, 7
    %v1017 = vsub.s32 %v1014, %v1016
    %v1018 = vrot.slane %v1004, %v1017
    %v1021 = vmul.f32 %v281, %v1011
    %v1022 = vmul.f32 %v285, %v1018
    %v1023 = vadd.f32 %v982, %v1021
    %v1024 = vadd.f32 %v983, %v1022
    %1025 = vrot.lane.b32.xlu0 %v869, 112
    %v1026 = vpop.permute.xlu0 %1025
    %1027 = vrot.lane.b32.xlu0 %v876, 112
    %v1028 = vpop.permute.xlu0 %1027
    %v1029 = vsel %vm298, %v1026, %v1028
    %v1030 = vsel %vm298, %v1028, %v1026
    %1031 = vrot.lane.b32.xlu0 %v902, 112
    %v1032 = vpop.permute.xlu0 %1031
    %1033 = vrot.lane.b32.xlu0 %v909, 112
    %v1034 = vpop.permute.xlu0 %1033
    %v1035 = vsel %vm298, %v1032, %v1034
    %v1036 = vsel %vm298, %v1034, %v1032
    %s1037 = sld [smem:[#allocation3 + $0x1f]]
    %s1038 = sld [smem:[#allocation3 + $0x50]]
    %v1039 = vstv %s1037
    %v1040 = vmul.f32 %v1039, %v1029
    %v1041 = vmul.f32 %v1039, %v1030
    %v1042 = vstv %s1038
    %v1043 = vmul.f32 %v1042, %v1035
    %v1044 = vmul.f32 %v1042, %v1036
    %v1045 = vadd.f32 %v1040, %v1043
    %v1046 = vadd.f32 %v1041, %v1044
    %v1047 = vmul.f32 %v321, %v1045
    %v1048 = vmul.f32 %v325, %v1046
    %v1049 = vadd.f32 %v1023, %v1047
    %v1050 = vadd.f32 %v1024, %v1048
    %1051 = vrot.lane.b32.xlu0 %v869, 96
    %v1052 = vpop.permute.xlu0 %1051
    %1053 = vrot.lane.b32.xlu0 %v876, 96
    %v1054 = vpop.permute.xlu0 %1053
    %v1055 = vsel %vm338, %v1052, %v1054
    %v1056 = vsel %vm338, %v1054, %v1052
    %1057 = vrot.lane.b32.xlu0 %v902, 96
    %v1058 = vpop.permute.xlu0 %1057
    %1059 = vrot.lane.b32.xlu0 %v909, 96
    %v1060 = vpop.permute.xlu0 %1059
    %v1061 = vsel %vm338, %v1058, %v1060
    %v1062 = vsel %vm338, %v1060, %v1058
    %s1063 = sld [smem:[#allocation3 + $0x26]]
    %s1064 = sld [smem:[#allocation3 + $0x57]]
    %v1065 = vstv %s1063
    %v1066 = vmul.f32 %v1065, %v1055
    %v1067 = vmul.f32 %v1065, %v1056
    %v1068 = vstv %s1064
    %v1069 = vmul.f32 %v1068, %v1061
    %v1070 = vmul.f32 %v1068, %v1062
    %v1071 = vadd.f32 %v1066, %v1069
    %v1072 = vadd.f32 %v1067, %v1070
    %v1073 = vmul.f32 %v361, %v1071
    %v1074 = vmul.f32 %v365, %v1072
    %v1075 = vadd.f32 %v1049, %v1073
    %v1076 = vadd.f32 %v1050, %v1074
    %1077 = vrot.lane.b32.xlu0 %v869, 80
    %v1078 = vpop.permute.xlu0 %1077
    %1079 = vrot.lane.b32.xlu0 %v876, 80
    %v1080 = vpop.permute.xlu0 %1079
    %v1081 = vsel %vm378, %v1078, %v1080
    %v1082 = vsel %vm378, %v1080, %v1078
    %1083 = vrot.lane.b32.xlu0 %v902, 80
    %v1084 = vpop.permute.xlu0 %1083
    %1085 = vrot.lane.b32.xlu0 %v909, 80
    %v1086 = vpop.permute.xlu0 %1085
    %v1087 = vsel %vm378, %v1084, %v1086
    %v1088 = vsel %vm378, %v1086, %v1084
    %s1089 = sld [smem:[#allocation3 + $0x2d]]
    %s1090 = sld [smem:[#allocation3 + $0x5e]]
    %v1091 = vstv %s1089
    %v1092 = vmul.f32 %v1091, %v1081
    %v1093 = vmul.f32 %v1091, %v1082
    %v1094 = vstv %s1090
    %v1095 = vmul.f32 %v1094, %v1087
    %v1096 = vmul.f32 %v1094, %v1088
    %v1097 = vadd.f32 %v1092, %v1095
    %v1098 = vadd.f32 %v1093, %v1096
    %v1099 = vmul.f32 %v401, %v1097
    %v1100 = vmul.f32 %v405, %v1098
    %v1101 = vadd.f32 %v1075, %v1099
    %v1102 = vadd.f32 %v1076, %v1100
    %s1103 = scalar_lea.vmem %s3, 19
    %v1104 = vld [vmem:[%s1103] ss:$8 sm:$0x3]
    %1105 = vrot.lane.b32.xlu0 %v79, 127
    %v1106 = vpop.permute.xlu0 %1105
    %1107 = vrot.lane.b32.xlu0 %v86, 127
    %v1108 = vpop.permute.xlu0 %1107
    %vm1109 = vcmp.lt.s32.totalorder %v94, 127
    %v1110 = vsel %vm1109, %v1106, %v1108
    %v1111 = vsel %vm1109, %v1108, %v1106
    %1112 = vrot.lane.b32.xlu0 %v115, 127
    %v1113 = vpop.permute.xlu0 %1112
    %1114 = vrot.lane.b32.xlu0 %v122, 127
    %v1115 = vpop.permute.xlu0 %1114
    %v1116 = vsel %vm1109, %v1113, %v1115
    %v1117 = vsel %vm1109, %v1115, %v1113
    %v1119 = vlaneseq
    %v1120 = vshrl.u32 %v1119, 7
    %v1121 = vsub.s32 0, %v1120
    %v1122 = vrot.slane %v1104, %v1121
    %v1123 = vlaneseq
    %v1124 = vshrl.u32 %v1123, 7
    %v1125 = vsub.s32 1, %v1124
    %v1126 = vrot.slane %v1104, %v1125
    %v1129 = vmul.f32 %v1110, %v1122
    %v1130 = vmul.f32 %v1111, %v1126
    %v1131 = vmul.f32 %v1116, %v1122
    %v1132 = vmul.f32 %v1117, %v1126
    %1133 = vrot.lane.b32.xlu0 %v1129, 48
    %v1134 = vpop.permute.xlu0 %1133
    %1135 = vrot.lane.b32.xlu0 %v1130, 48
    %v1136 = vpop.permute.xlu0 %1135
    %v1137 = vsel %vm151, %v1134, %v1136
    %v1138 = vsel %vm151, %v1136, %v1134
    %1139 = vrot.lane.b32.xlu0 %v1131, 48
    %v1140 = vpop.permute.xlu0 %1139
    %1141 = vrot.lane.b32.xlu0 %v1132, 48
    %v1142 = vpop.permute.xlu0 %1141
    %v1143 = vsel %vm151, %v1140, %v1142
    %v1144 = vsel %vm151, %v1142, %v1140
    %s1145 = sld [smem:[#allocation3 + $0x4]]
    %s1146 = sld [smem:[#allocation3 + $0x35]]
    %v1147 = vstv %s1145
    %v1148 = vmul.f32 %v1147, %v1138
    %v1149 = vmul.f32 %v1147, %v1137
    %v1150 = vstv %s1146
    %v1151 = vmul.f32 %v1150, %v1144
    %v1152 = vmul.f32 %v1150, %v1143
    %v1153 = vadd.f32 %v1148, %v1151
    %v1154 = vadd.f32 %v1149, %v1152
    %v1155 = vmul.f32 %v174, %v1153
    %v1156 = vmul.f32 %v178, %v1154
    %v1157 = vadd.f32 %v1101, %v1155
    %v1158 = vadd.f32 %v1102, %v1156
    %1159 = vrot.lane.b32.xlu0 %v1129, 32
    %v1160 = vpop.permute.xlu0 %1159
    %1161 = vrot.lane.b32.xlu0 %v1130, 32
    %v1162 = vpop.permute.xlu0 %1161
    %v1163 = vsel %vm191, %v1160, %v1162
    %v1164 = vsel %vm191, %v1162, %v1160
    %1165 = vrot.lane.b32.xlu0 %v1131, 32
    %v1166 = vpop.permute.xlu0 %1165
    %1167 = vrot.lane.b32.xlu0 %v1132, 32
    %v1168 = vpop.permute.xlu0 %1167
    %v1169 = vsel %vm191, %v1166, %v1168
    %v1170 = vsel %vm191, %v1168, %v1166
    %s1171 = sld [smem:[#allocation3 + $0xb]]
    %s1172 = sld [smem:[#allocation3 + $0x3c]]
    %v1173 = vstv %s1171
    %v1174 = vmul.f32 %v1173, %v1164
    %v1175 = vmul.f32 %v1173, %v1163
    %v1176 = vstv %s1172
    %v1177 = vmul.f32 %v1176, %v1170
    %v1178 = vmul.f32 %v1176, %v1169
    %v1179 = vadd.f32 %v1174, %v1177
    %v1180 = vadd.f32 %v1175, %v1178
    %v1181 = vmul.f32 %v214, %v1179
    %v1182 = vmul.f32 %v218, %v1180
    %v1183 = vadd.f32 %v1157, %v1181
    %v1184 = vadd.f32 %v1158, %v1182
    %1185 = vrot.lane.b32.xlu0 %v1129, 16
    %v1186 = vpop.permute.xlu0 %1185
    %1187 = vrot.lane.b32.xlu0 %v1130, 16
    %v1188 = vpop.permute.xlu0 %1187
    %v1189 = vsel %vm231, %v1186, %v1188
    %v1190 = vsel %vm231, %v1188, %v1186
    %1191 = vrot.lane.b32.xlu0 %v1131, 16
    %v1192 = vpop.permute.xlu0 %1191
    %1193 = vrot.lane.b32.xlu0 %v1132, 16
    %v1194 = vpop.permute.xlu0 %1193
    %v1195 = vsel %vm231, %v1192, %v1194
    %v1196 = vsel %vm231, %v1194, %v1192
    %s1197 = sld [smem:[#allocation3 + $0x12]]
    %s1198 = sld [smem:[#allocation3 + $0x43]]
    %v1199 = vstv %s1197
    %v1200 = vmul.f32 %v1199, %v1190
    %v1201 = vmul.f32 %v1199, %v1189
    %v1202 = vstv %s1198
    %v1203 = vmul.f32 %v1202, %v1196
    %v1204 = vmul.f32 %v1202, %v1195
    %v1205 = vadd.f32 %v1200, %v1203
    %v1206 = vadd.f32 %v1201, %v1204
    %v1207 = vmul.f32 %v254, %v1205
    %v1208 = vmul.f32 %v258, %v1206
    %v1209 = vadd.f32 %v1183, %v1207
    %v1210 = vadd.f32 %v1184, %v1208
    %s1211 = sld [smem:[#allocation3 + $0x19]]
    %s1212 = sld [smem:[#allocation3 + $0x4a]]
    %v1213 = vstv %s1211
    %v1214 = vmul.f32 %v1213, %v1129
    %v1215 = vmul.f32 %v1213, %v1130
    %v1216 = vstv %s1212
    %v1217 = vmul.f32 %v1216, %v1131
    %v1218 = vmul.f32 %v1216, %v1132
    %v1219 = vadd.f32 %v1214, %v1217
    %v1220 = vadd.f32 %v1215, %v1218
    %v1221 = vmul.f32 %v281, %v1219
    %v1222 = vmul.f32 %v285, %v1220
    %v1223 = vadd.f32 %v1209, %v1221
    %v1224 = vadd.f32 %v1210, %v1222
    %1225 = vrot.lane.b32.xlu0 %v1129, 112
    %v1226 = vpop.permute.xlu0 %1225
    %1227 = vrot.lane.b32.xlu0 %v1130, 112
    %v1228 = vpop.permute.xlu0 %1227
    %v1229 = vsel %vm298, %v1226, %v1228
    %v1230 = vsel %vm298, %v1228, %v1226
    %1231 = vrot.lane.b32.xlu0 %v1131, 112
    %v1232 = vpop.permute.xlu0 %1231
    %1233 = vrot.lane.b32.xlu0 %v1132, 112
    %v1234 = vpop.permute.xlu0 %1233
    %v1235 = vsel %vm298, %v1232, %v1234
    %v1236 = vsel %vm298, %v1234, %v1232
    %s1237 = sld [smem:[#allocation3 + $0x20]]
    %s1238 = sld [smem:[#allocation3 + $0x51]]
    %v1239 = vstv %s1237
    %v1240 = vmul.f32 %v1239, %v1229
    %v1241 = vmul.f32 %v1239, %v1230
    %v1242 = vstv %s1238
    %v1243 = vmul.f32 %v1242, %v1235
    %v1244 = vmul.f32 %v1242, %v1236
    %v1245 = vadd.f32 %v1240, %v1243
    %v1246 = vadd.f32 %v1241, %v1244
    %v1247 = vmul.f32 %v321, %v1245
    %v1248 = vmul.f32 %v325, %v1246
    %v1249 = vadd.f32 %v1223, %v1247
    %v1250 = vadd.f32 %v1224, %v1248
    %1251 = vrot.lane.b32.xlu0 %v1129, 96
    %v1252 = vpop.permute.xlu0 %1251
    %1253 = vrot.lane.b32.xlu0 %v1130, 96
    %v1254 = vpop.permute.xlu0 %1253
    %v1255 = vsel %vm338, %v1252, %v1254
    %v1256 = vsel %vm338, %v1254, %v1252
    %1257 = vrot.lane.b32.xlu0 %v1131, 96
    %v1258 = vpop.permute.xlu0 %1257
    %1259 = vrot.lane.b32.xlu0 %v1132, 96
    %v1260 = vpop.permute.xlu0 %1259
    %v1261 = vsel %vm338, %v1258, %v1260
    %v1262 = vsel %vm338, %v1260, %v1258
    %s1263 = sld [smem:[#allocation3 + $0x27]]
    %s1264 = sld [smem:[#allocation3 + $0x58]]
    %v1265 = vstv %s1263
    %v1266 = vmul.f32 %v1265, %v1255
    %v1267 = vmul.f32 %v1265, %v1256
    %v1268 = vstv %s1264
    %v1269 = vmul.f32 %v1268, %v1261
    %v1270 = vmul.f32 %v1268, %v1262
    %v1271 = vadd.f32 %v1266, %v1269
    %v1272 = vadd.f32 %v1267, %v1270
    %v1273 = vmul.f32 %v361, %v1271
    %v1274 = vmul.f32 %v365, %v1272
    %v1275 = vadd.f32 %v1249, %v1273
    %v1276 = vadd.f32 %v1250, %v1274
    %1277 = vrot.lane.b32.xlu0 %v1129, 80
    %v1278 = vpop.permute.xlu0 %1277
    %1279 = vrot.lane.b32.xlu0 %v1130, 80
    %v1280 = vpop.permute.xlu0 %1279
    %v1281 = vsel %vm378, %v1278, %v1280
    %v1282 = vsel %vm378, %v1280, %v1278
    %1283 = vrot.lane.b32.xlu0 %v1131, 80
    %v1284 = vpop.permute.xlu0 %1283
    %1285 = vrot.lane.b32.xlu0 %v1132, 80
    %v1286 = vpop.permute.xlu0 %1285
    %v1287 = vsel %vm378, %v1284, %v1286
    %v1288 = vsel %vm378, %v1286, %v1284
    %s1289 = sld [smem:[#allocation3 + $0x2e]]
    %s1290 = sld [smem:[#allocation3 + $0x5f]]
    %v1291 = vstv %s1289
    %v1292 = vmul.f32 %v1291, %v1281
    %v1293 = vmul.f32 %v1291, %v1282
    %v1294 = vstv %s1290
    %v1295 = vmul.f32 %v1294, %v1287
    %v1296 = vmul.f32 %v1294, %v1288
    %v1297 = vadd.f32 %v1292, %v1295
    %v1298 = vadd.f32 %v1293, %v1296
    %v1299 = vmul.f32 %v401, %v1297
    %v1300 = vmul.f32 %v405, %v1298
    %v1301 = vadd.f32 %v1275, %v1299
    %v1302 = vadd.f32 %v1276, %v1300
    %s1303 = scalar_lea.vmem %s3, 20
    %v1304 = vld [vmem:[%s1303] ss:$8 sm:$0x3]
    %1305 = vrot.lane.b32.xlu0 %v79, 126
    %v1306 = vpop.permute.xlu0 %1305
    %1307 = vrot.lane.b32.xlu0 %v86, 126
    %v1308 = vpop.permute.xlu0 %1307
    %vm1309 = vcmp.lt.s32.totalorder %v94, 126
    %v1310 = vsel %vm1309, %v1306, %v1308
    %v1311 = vsel %vm1309, %v1308, %v1306
    %1312 = vrot.lane.b32.xlu0 %v115, 126
    %v1313 = vpop.permute.xlu0 %1312
    %1314 = vrot.lane.b32.xlu0 %v122, 126
    %v1315 = vpop.permute.xlu0 %1314
    %v1316 = vsel %vm1309, %v1313, %v1315
    %v1317 = vsel %vm1309, %v1315, %v1313
    %v1319 = vlaneseq
    %v1320 = vshrl.u32 %v1319, 7
    %v1321 = vsub.s32 0, %v1320
    %v1322 = vrot.slane %v1304, %v1321
    %v1323 = vlaneseq
    %v1324 = vshrl.u32 %v1323, 7
    %v1325 = vsub.s32 1, %v1324
    %v1326 = vrot.slane %v1304, %v1325
    %v1329 = vmul.f32 %v1310, %v1322
    %v1330 = vmul.f32 %v1311, %v1326
    %v1331 = vmul.f32 %v1316, %v1322
    %v1332 = vmul.f32 %v1317, %v1326
    %1333 = vrot.lane.b32.xlu0 %v1329, 48
    %v1334 = vpop.permute.xlu0 %1333
    %1335 = vrot.lane.b32.xlu0 %v1330, 48
    %v1336 = vpop.permute.xlu0 %1335
    %v1337 = vsel %vm151, %v1334, %v1336
    %v1338 = vsel %vm151, %v1336, %v1334
    %1339 = vrot.lane.b32.xlu0 %v1331, 48
    %v1340 = vpop.permute.xlu0 %1339
    %1341 = vrot.lane.b32.xlu0 %v1332, 48
    %v1342 = vpop.permute.xlu0 %1341
    %v1343 = vsel %vm151, %v1340, %v1342
    %v1344 = vsel %vm151, %v1342, %v1340
    %s1345 = sld [smem:[#allocation3 + $0x5]]
    %s1346 = sld [smem:[#allocation3 + $0x36]]
    %v1347 = vstv %s1345
    %v1348 = vmul.f32 %v1347, %v1338
    %v1349 = vmul.f32 %v1347, %v1337
    %v1350 = vstv %s1346
    %v1351 = vmul.f32 %v1350, %v1344
    %v1352 = vmul.f32 %v1350, %v1343
    %v1353 = vadd.f32 %v1348, %v1351
    %v1354 = vadd.f32 %v1349, %v1352
    %v1355 = vmul.f32 %v174, %v1353
    %v1356 = vmul.f32 %v178, %v1354
    %v1357 = vadd.f32 %v1301, %v1355
    %v1358 = vadd.f32 %v1302, %v1356
    %1359 = vrot.lane.b32.xlu0 %v1329, 32
    %v1360 = vpop.permute.xlu0 %1359
    %1361 = vrot.lane.b32.xlu0 %v1330, 32
    %v1362 = vpop.permute.xlu0 %1361
    %v1363 = vsel %vm191, %v1360, %v1362
    %v1364 = vsel %vm191, %v1362, %v1360
    %1365 = vrot.lane.b32.xlu0 %v1331, 32
    %v1366 = vpop.permute.xlu0 %1365
    %1367 = vrot.lane.b32.xlu0 %v1332, 32
    %v1368 = vpop.permute.xlu0 %1367
    %v1369 = vsel %vm191, %v1366, %v1368
    %v1370 = vsel %vm191, %v1368, %v1366
    %s1371 = sld [smem:[#allocation3 + $0xc]]
    %s1372 = sld [smem:[#allocation3 + $0x3d]]
    %v1373 = vstv %s1371
    %v1374 = vmul.f32 %v1373, %v1364
    %v1375 = vmul.f32 %v1373, %v1363
    %v1376 = vstv %s1372
    %v1377 = vmul.f32 %v1376, %v1370
    %v1378 = vmul.f32 %v1376, %v1369
    %v1379 = vadd.f32 %v1374, %v1377
    %v1380 = vadd.f32 %v1375, %v1378
    %v1381 = vmul.f32 %v214, %v1379
    %v1382 = vmul.f32 %v218, %v1380
    %v1383 = vadd.f32 %v1357, %v1381
    %v1384 = vadd.f32 %v1358, %v1382
    %1385 = vrot.lane.b32.xlu0 %v1329, 16
    %v1386 = vpop.permute.xlu0 %1385
    %1387 = vrot.lane.b32.xlu0 %v1330, 16
    %v1388 = vpop.permute.xlu0 %1387
    %v1389 = vsel %vm231, %v1386, %v1388
    %v1390 = vsel %vm231, %v1388, %v1386
    %1391 = vrot.lane.b32.xlu0 %v1331, 16
    %v1392 = vpop.permute.xlu0 %1391
    %1393 = vrot.lane.b32.xlu0 %v1332, 16
    %v1394 = vpop.permute.xlu0 %1393
    %v1395 = vsel %vm231, %v1392, %v1394
    %v1396 = vsel %vm231, %v1394, %v1392
    %s1397 = sld [smem:[#allocation3 + $0x13]]
    %s1398 = sld [smem:[#allocation3 + $0x44]]
    %v1399 = vstv %s1397
    %v1400 = vmul.f32 %v1399, %v1390
    %v1401 = vmul.f32 %v1399, %v1389
    %v1402 = vstv %s1398
    %v1403 = vmul.f32 %v1402, %v1396
    %v1404 = vmul.f32 %v1402, %v1395
    %v1405 = vadd.f32 %v1400, %v1403
    %v1406 = vadd.f32 %v1401, %v1404
    %v1407 = vmul.f32 %v254, %v1405
    %v1408 = vmul.f32 %v258, %v1406
    %v1409 = vadd.f32 %v1383, %v1407
    %v1410 = vadd.f32 %v1384, %v1408
    %s1411 = sld [smem:[#allocation3 + $0x1a]]
    %s1412 = sld [smem:[#allocation3 + $0x4b]]
    %v1413 = vstv %s1411
    %v1414 = vmul.f32 %v1413, %v1329
    %v1415 = vmul.f32 %v1413, %v1330
    %v1416 = vstv %s1412
    %v1417 = vmul.f32 %v1416, %v1331
    %v1418 = vmul.f32 %v1416, %v1332
    %v1419 = vadd.f32 %v1414, %v1417
    %v1420 = vadd.f32 %v1415, %v1418
    %v1421 = vmul.f32 %v281, %v1419
    %v1422 = vmul.f32 %v285, %v1420
    %v1423 = vadd.f32 %v1409, %v1421
    %v1424 = vadd.f32 %v1410, %v1422
    %1425 = vrot.lane.b32.xlu0 %v1329, 112
    %v1426 = vpop.permute.xlu0 %1425
    %1427 = vrot.lane.b32.xlu0 %v1330, 112
    %v1428 = vpop.permute.xlu0 %1427
    %v1429 = vsel %vm298, %v1426, %v1428
    %v1430 = vsel %vm298, %v1428, %v1426
    %1431 = vrot.lane.b32.xlu0 %v1331, 112
    %v1432 = vpop.permute.xlu0 %1431
    %1433 = vrot.lane.b32.xlu0 %v1332, 112
    %v1434 = vpop.permute.xlu0 %1433
    %v1435 = vsel %vm298, %v1432, %v1434
    %v1436 = vsel %vm298, %v1434, %v1432
    %s1437 = sld [smem:[#allocation3 + $0x21]]
    %s1438 = sld [smem:[#allocation3 + $0x52]]
    %v1439 = vstv %s1437
    %v1440 = vmul.f32 %v1439, %v1429
    %v1441 = vmul.f32 %v1439, %v1430
    %v1442 = vstv %s1438
    %v1443 = vmul.f32 %v1442, %v1435
    %v1444 = vmul.f32 %v1442, %v1436
    %v1445 = vadd.f32 %v1440, %v1443
    %v1446 = vadd.f32 %v1441, %v1444
    %v1447 = vmul.f32 %v321, %v1445
    %v1448 = vmul.f32 %v325, %v1446
    %v1449 = vadd.f32 %v1423, %v1447
    %v1450 = vadd.f32 %v1424, %v1448
    %1451 = vrot.lane.b32.xlu0 %v1329, 96
    %v1452 = vpop.permute.xlu0 %1451
    %1453 = vrot.lane.b32.xlu0 %v1330, 96
    %v1454 = vpop.permute.xlu0 %1453
    %v1455 = vsel %vm338, %v1452, %v1454
    %v1456 = vsel %vm338, %v1454, %v1452
    %1457 = vrot.lane.b32.xlu0 %v1331, 96
    %v1458 = vpop.permute.xlu0 %1457
    %1459 = vrot.lane.b32.xlu0 %v1332, 96
    %v1460 = vpop.permute.xlu0 %1459
    %v1461 = vsel %vm338, %v1458, %v1460
    %v1462 = vsel %vm338, %v1460, %v1458
    %s1463 = sld [smem:[#allocation3 + $0x28]]
    %s1464 = sld [smem:[#allocation3 + $0x59]]
    %v1465 = vstv %s1463
    %v1466 = vmul.f32 %v1465, %v1455
    %v1467 = vmul.f32 %v1465, %v1456
    %v1468 = vstv %s1464
    %v1469 = vmul.f32 %v1468, %v1461
    %v1470 = vmul.f32 %v1468, %v1462
    %v1471 = vadd.f32 %v1466, %v1469
    %v1472 = vadd.f32 %v1467, %v1470
    %v1473 = vmul.f32 %v361, %v1471
    %v1474 = vmul.f32 %v365, %v1472
    %v1475 = vadd.f32 %v1449, %v1473
    %v1476 = vadd.f32 %v1450, %v1474
    %1477 = vrot.lane.b32.xlu0 %v1329, 80
    %v1478 = vpop.permute.xlu0 %1477
    %1479 = vrot.lane.b32.xlu0 %v1330, 80
    %v1480 = vpop.permute.xlu0 %1479
    %v1481 = vsel %vm378, %v1478, %v1480
    %v1482 = vsel %vm378, %v1480, %v1478
    %1483 = vrot.lane.b32.xlu0 %v1331, 80
    %v1484 = vpop.permute.xlu0 %1483
    %1485 = vrot.lane.b32.xlu0 %v1332, 80
    %v1486 = vpop.permute.xlu0 %1485
    %v1487 = vsel %vm378, %v1484, %v1486
    %v1488 = vsel %vm378, %v1486, %v1484
    %s1489 = sld [smem:[#allocation3 + $0x2f]]
    %s1490 = sld [smem:[#allocation3 + $0x60]]
    %v1491 = vstv %s1489
    %v1492 = vmul.f32 %v1491, %v1481
    %v1493 = vmul.f32 %v1491, %v1482
    %v1494 = vstv %s1490
    %v1495 = vmul.f32 %v1494, %v1487
    %v1496 = vmul.f32 %v1494, %v1488
    %v1497 = vadd.f32 %v1492, %v1495
    %v1498 = vadd.f32 %v1493, %v1496
    %v1499 = vmul.f32 %v401, %v1497
    %v1500 = vmul.f32 %v405, %v1498
    %v1501 = vadd.f32 %v1475, %v1499
    %v1502 = vadd.f32 %v1476, %v1500
    %s1503 = scalar_lea.vmem %s3, 21
    %v1504 = vld [vmem:[%s1503] ss:$8 sm:$0x3]
    %1505 = vrot.lane.b32.xlu0 %v79, 125
    %v1506 = vpop.permute.xlu0 %1505
    %1507 = vrot.lane.b32.xlu0 %v86, 125
    %v1508 = vpop.permute.xlu0 %1507
    %vm1509 = vcmp.lt.s32.totalorder %v94, 125
    %v1510 = vsel %vm1509, %v1506, %v1508
    %v1511 = vsel %vm1509, %v1508, %v1506
    %1512 = vrot.lane.b32.xlu0 %v115, 125
    %v1513 = vpop.permute.xlu0 %1512
    %1514 = vrot.lane.b32.xlu0 %v122, 125
    %v1515 = vpop.permute.xlu0 %1514
    %v1516 = vsel %vm1509, %v1513, %v1515
    %v1517 = vsel %vm1509, %v1515, %v1513
    %v1519 = vlaneseq
    %v1520 = vshrl.u32 %v1519, 7
    %v1521 = vsub.s32 0, %v1520
    %v1522 = vrot.slane %v1504, %v1521
    %v1523 = vlaneseq
    %v1524 = vshrl.u32 %v1523, 7
    %v1525 = vsub.s32 1, %v1524
    %v1526 = vrot.slane %v1504, %v1525
    %v1529 = vmul.f32 %v1510, %v1522
    %v1530 = vmul.f32 %v1511, %v1526
    %v1531 = vmul.f32 %v1516, %v1522
    %v1532 = vmul.f32 %v1517, %v1526
    %1533 = vrot.lane.b32.xlu0 %v1529, 48
    %v1534 = vpop.permute.xlu0 %1533
    %1535 = vrot.lane.b32.xlu0 %v1530, 48
    %v1536 = vpop.permute.xlu0 %1535
    %v1537 = vsel %vm151, %v1534, %v1536
    %v1538 = vsel %vm151, %v1536, %v1534
    %1539 = vrot.lane.b32.xlu0 %v1531, 48
    %v1540 = vpop.permute.xlu0 %1539
    %1541 = vrot.lane.b32.xlu0 %v1532, 48
    %v1542 = vpop.permute.xlu0 %1541
    %v1543 = vsel %vm151, %v1540, %v1542
    %v1544 = vsel %vm151, %v1542, %v1540
    %s1545 = sld [smem:[#allocation3 + $0x6]]
    %s1546 = sld [smem:[#allocation3 + $0x37]]
    %v1547 = vstv %s1545
    %v1548 = vmul.f32 %v1547, %v1538
    %v1549 = vmul.f32 %v1547, %v1537
    %v1550 = vstv %s1546
    %v1551 = vmul.f32 %v1550, %v1544
    %v1552 = vmul.f32 %v1550, %v1543
    %v1553 = vadd.f32 %v1548, %v1551
    %v1554 = vadd.f32 %v1549, %v1552
    %v1555 = vmul.f32 %v174, %v1553
    %v1556 = vmul.f32 %v178, %v1554
    %v1557 = vadd.f32 %v1501, %v1555
    %v1558 = vadd.f32 %v1502, %v1556
    %1559 = vrot.lane.b32.xlu0 %v1529, 32
    %v1560 = vpop.permute.xlu0 %1559
    %1561 = vrot.lane.b32.xlu0 %v1530, 32
    %v1562 = vpop.permute.xlu0 %1561
    %v1563 = vsel %vm191, %v1560, %v1562
    %v1564 = vsel %vm191, %v1562, %v1560
    %1565 = vrot.lane.b32.xlu0 %v1531, 32
    %v1566 = vpop.permute.xlu0 %1565
    %1567 = vrot.lane.b32.xlu0 %v1532, 32
    %v1568 = vpop.permute.xlu0 %1567
    %v1569 = vsel %vm191, %v1566, %v1568
    %v1570 = vsel %vm191, %v1568, %v1566
    %s1571 = sld [smem:[#allocation3 + $0xd]]
    %s1572 = sld [smem:[#allocation3 + $0x3e]]
    %v1573 = vstv %s1571
    %v1574 = vmul.f32 %v1573, %v1564
    %v1575 = vmul.f32 %v1573, %v1563
    %v1576 = vstv %s1572
    %v1577 = vmul.f32 %v1576, %v1570
    %v1578 = vmul.f32 %v1576, %v1569
    %v1579 = vadd.f32 %v1574, %v1577
    %v1580 = vadd.f32 %v1575, %v1578
    %v1581 = vmul.f32 %v214, %v1579
    %v1582 = vmul.f32 %v218, %v1580
    %v1583 = vadd.f32 %v1557, %v1581
    %v1584 = vadd.f32 %v1558, %v1582
    %1585 = vrot.lane.b32.xlu0 %v1529, 16
    %v1586 = vpop.permute.xlu0 %1585
    %1587 = vrot.lane.b32.xlu0 %v1530, 16
    %v1588 = vpop.permute.xlu0 %1587
    %v1589 = vsel %vm231, %v1586, %v1588
    %v1590 = vsel %vm231, %v1588, %v1586
    %1591 = vrot.lane.b32.xlu0 %v1531, 16
    %v1592 = vpop.permute.xlu0 %1591
    %1593 = vrot.lane.b32.xlu0 %v1532, 16
    %v1594 = vpop.permute.xlu0 %1593
    %v1595 = vsel %vm231, %v1592, %v1594
    %v1596 = vsel %vm231, %v1594, %v1592
    %s1597 = sld [smem:[#allocation3 + $0x14]]
    %s1598 = sld [smem:[#allocation3 + $0x45]]
    %v1599 = vstv %s1597
    %v1600 = vmul.f32 %v1599, %v1590
    %v1601 = vmul.f32 %v1599, %v1589
    %v1602 = vstv %s1598
    %v1603 = vmul.f32 %v1602, %v1596
    %v1604 = vmul.f32 %v1602, %v1595
    %v1605 = vadd.f32 %v1600, %v1603
    %v1606 = vadd.f32 %v1601, %v1604
    %v1607 = vmul.f32 %v254, %v1605
    %v1608 = vmul.f32 %v258, %v1606
    %v1609 = vadd.f32 %v1583, %v1607
    %v1610 = vadd.f32 %v1584, %v1608
    %s1611 = sld [smem:[#allocation3 + $0x1b]]
    %s1612 = sld [smem:[#allocation3 + $0x4c]]
    %v1613 = vstv %s1611
    %v1614 = vmul.f32 %v1613, %v1529
    %v1615 = vmul.f32 %v1613, %v1530
    %v1616 = vstv %s1612
    %v1617 = vmul.f32 %v1616, %v1531
    %v1618 = vmul.f32 %v1616, %v1532
    %v1619 = vadd.f32 %v1614, %v1617
    %v1620 = vadd.f32 %v1615, %v1618
    %v1621 = vmul.f32 %v281, %v1619
    %v1622 = vmul.f32 %v285, %v1620
    %v1623 = vadd.f32 %v1609, %v1621
    %v1624 = vadd.f32 %v1610, %v1622
    %1625 = vrot.lane.b32.xlu0 %v1529, 112
    %v1626 = vpop.permute.xlu0 %1625
    %1627 = vrot.lane.b32.xlu0 %v1530, 112
    %v1628 = vpop.permute.xlu0 %1627
    %v1629 = vsel %vm298, %v1626, %v1628
    %v1630 = vsel %vm298, %v1628, %v1626
    %1631 = vrot.lane.b32.xlu0 %v1531, 112
    %v1632 = vpop.permute.xlu0 %1631
    %1633 = vrot.lane.b32.xlu0 %v1532, 112
    %v1634 = vpop.permute.xlu0 %1633
    %v1635 = vsel %vm298, %v1632, %v1634
    %v1636 = vsel %vm298, %v1634, %v1632
    %s1637 = sld [smem:[#allocation3 + $0x22]]
    %s1638 = sld [smem:[#allocation3 + $0x53]]
    %v1639 = vstv %s1637
    %v1640 = vmul.f32 %v1639, %v1629
    %v1641 = vmul.f32 %v1639, %v1630
    %v1642 = vstv %s1638
    %v1643 = vmul.f32 %v1642, %v1635
    %v1644 = vmul.f32 %v1642, %v1636
    %v1645 = vadd.f32 %v1640, %v1643
    %v1646 = vadd.f32 %v1641, %v1644
    %v1647 = vmul.f32 %v321, %v1645
    %v1648 = vmul.f32 %v325, %v1646
    %v1649 = vadd.f32 %v1623, %v1647
    %v1650 = vadd.f32 %v1624, %v1648
    %1651 = vrot.lane.b32.xlu0 %v1529, 96
    %v1652 = vpop.permute.xlu0 %1651
    %1653 = vrot.lane.b32.xlu0 %v1530, 96
    %v1654 = vpop.permute.xlu0 %1653
    %v1655 = vsel %vm338, %v1652, %v1654
    %v1656 = vsel %vm338, %v1654, %v1652
    %1657 = vrot.lane.b32.xlu0 %v1531, 96
    %v1658 = vpop.permute.xlu0 %1657
    %1659 = vrot.lane.b32.xlu0 %v1532, 96
    %v1660 = vpop.permute.xlu0 %1659
    %v1661 = vsel %vm338, %v1658, %v1660
    %v1662 = vsel %vm338, %v1660, %v1658
    %s1663 = sld [smem:[#allocation3 + $0x29]]
    %s1664 = sld [smem:[#allocation3 + $0x5a]]
    %v1665 = vstv %s1663
    %v1666 = vmul.f32 %v1665, %v1655
    %v1667 = vmul.f32 %v1665, %v1656
    %v1668 = vstv %s1664
    %v1669 = vmul.f32 %v1668, %v1661
    %v1670 = vmul.f32 %v1668, %v1662
    %v1671 = vadd.f32 %v1666, %v1669
    %v1672 = vadd.f32 %v1667, %v1670
    %v1673 = vmul.f32 %v361, %v1671
    %v1674 = vmul.f32 %v365, %v1672
    %v1675 = vadd.f32 %v1649, %v1673
    %v1676 = vadd.f32 %v1650, %v1674
    %1677 = vrot.lane.b32.xlu0 %v1529, 80
    %v1678 = vpop.permute.xlu0 %1677
    %1679 = vrot.lane.b32.xlu0 %v1530, 80
    %v1680 = vpop.permute.xlu0 %1679
    %v1681 = vsel %vm378, %v1678, %v1680
    %v1682 = vsel %vm378, %v1680, %v1678
    %1683 = vrot.lane.b32.xlu0 %v1531, 80
    %v1684 = vpop.permute.xlu0 %1683
    %1685 = vrot.lane.b32.xlu0 %v1532, 80
    %v1686 = vpop.permute.xlu0 %1685
    %v1687 = vsel %vm378, %v1684, %v1686
    %v1688 = vsel %vm378, %v1686, %v1684
    %s1689 = sld [smem:[#allocation3 + $0x30]]
    %s1690 = sld [smem:[#allocation3 + $0x61]]
    %v1691 = vstv %s1689
    %v1692 = vmul.f32 %v1691, %v1681
    %v1693 = vmul.f32 %v1691, %v1682
    %v1694 = vstv %s1690
    %v1695 = vmul.f32 %v1694, %v1687
    %v1696 = vmul.f32 %v1694, %v1688
    %v1697 = vadd.f32 %v1692, %v1695
    %v1698 = vadd.f32 %v1693, %v1696
    %v1699 = vmul.f32 %v401, %v1697
    %v1700 = vmul.f32 %v405, %v1698
    %v1701 = vadd.f32 %v1675, %v1699
    %v1702 = vadd.f32 %v1676, %v1700
    %v1703 = vxor.u32 %v1701, 2147483648
    %v1704 = vxor.u32 %v1702, 2147483648
    %v1705 = vmul.f32 %v1703, 1.442695
    %v1706 = vpow.pop %v1705
    %v1707 = vmul.f32 %v1704, 1.442695
    %v1708 = vpow.pop %v1707
    %v1709 = vadd.f32 %v1706, 1.0
    %v1710 = vadd.f32 %v1708, 1.0
    %v1711 = vrcp.pop %v1709
    %v1712 = vmul.f32 1.0, %v1711
    %v1713 = vrcp.pop %v1710
    %v1714 = vmul.f32 1.0, %v1713
    %v1717 = vcombine.low %v1712, %v1714
    %v1719 = vunpack.c.l.s4 1966171168
    %v1720 = vunpack.c.0.s8 %v1719
    %v1721 = vlaneseq
    %v1722 = vshrl.u32 %v1721, 7
    %v1723 = vsub.s32 %v1720, %v1722
    %v1724 = vrot.slane %v1717, %v1723
    %v1725 = vcombine.high %v1724, %v1724
    %v1727 = vunpack.c.l.s4 1966171168
    %v1728 = vunpack.c.0.s8 %v1727
    %v1729 = vlaneseq
    %v1730 = vshrl.u32 %v1729, 7
    %v1731 = vsub.s32 %v1728, %v1730
    %v1732 = vrot.slane %v1724, %v1731
    %v1734 = vunpack.c.l.s4 1966171168
    %v1735 = vunpack.c.0.s8 %v1734
    %v1736 = vlaneseq
    %v1737 = vshrl.u32 %v1736, 7
    %v1738 = vsub.s32 %v1735, %v1737
    %v1739 = vrot.slane %v1725, %v1738
    %v1742 = vlaneseq
    %vm1743 = vcmp.ge.s32.totalorder %v1742, 0
    %vm1744 = vcmp.lt.s32.totalorder %v1742, 256
    %vm1745 = vmand %vm1743, %vm1744
    %1746 = vst.msk [vmem:[%s4] sm:$0x3] %vm1745, %v1732
    %1747 = vst.msk [vmem:[%s4 + $0x2] sm:$0x3] %vm1745, %v1739
    // Predicated region
    $region22: #{spatial_attention_pallas.1} parent=1 // pred_check
      _
    $region23: #{spatial_attention_pallas.1} parent=1 // pred_check_branch
      %1749 = sbr.rel (0) target = $region25
    $region24: #{spatial_attention_pallas.1} parent=1 // pred_region
      _
    $region25: #{spatial_attention_pallas.1} parent=1 // pred_fallthru
      _
    // Predicated region
    $region26: #{spatial_attention_pallas.1} parent=1 // pred_check
      _
    $region27: #{spatial_attention_pallas.1} parent=1 // pred_check_branch
      %1751 = sbr.rel (0) target = $region29
    $region28: #{spatial_attention_pallas.1} parent=1 // pred_region
      _
    $region29: #{spatial_attention_pallas.1} parent=1 // pred_fallthru
      _
    %1752 = vsyncpa [#allocation4], 1

</llo_original>
